<compile_context>
chip_gen: v5e
topology: v5e:2x2
jax: 0.10.0
libtpu: 0.0.40
codegen_flags: <defaults>
</compile_context>

<pallas_src>
import functools

import jax
import jax.numpy as jnp
from jax.experimental import pallas as pl
from jax.experimental.pallas import tpu as pltpu


# ----------------------------------------------------------------------------
# Pallas kernels
# ----------------------------------------------------------------------------
def _conv_kernel(p_ref, w_ref, b_ref, o_ref):
    # p_ref: (1, 9*Cin, tp)  im2col patches (kernel-position-major rows)
    # w_ref: (Cout, 9*Cin)   reordered conv weights
    # b_ref: (Cout, 1)       bias (broadcast along lanes)
    # o_ref: (1, Cout, tp)
    acc = jnp.dot(w_ref[...], p_ref[0, :, :], preferred_element_type=jnp.float32)
    o_ref[0, :, :] = (acc + b_ref[...]).astype(o_ref.dtype)


def _conv_res_kernel(p_ref, w_ref, b_ref, r_ref, o_ref):
    # Same as _conv_kernel plus a fused residual add (the DCB skip connection).
    acc = jnp.dot(w_ref[...], p_ref[0, :, :], preferred_element_type=jnp.float32)
    o_ref[0, :, :] = (acc + b_ref[...] + r_ref[0, :, :]).astype(o_ref.dtype)


def _dyconv_kernel(yp_ref, wsa_ref, bias_ref, wafg_ref, bafg_ref, o_ref, *, kk):
    # yp_ref  : (1, kk, C, tp)  3x3 patches of conv1 output (= nn.Unfold output)
    # wsa_ref : (kk, C, 1)      depthwise conv_sa weights, [k, c]
    # bias_ref: (1, C, 1)       conv_sa bias + channel attention (per batch)
    # wafg_ref: (kk, C, C)      AFG 1x1 conv weights, [k, c_out, c_in]
    # bafg_ref: (kk, C, 1)      AFG bias, [k, c_out]
    # o_ref   : (1, C, tp)      LeakyReLU(dynamic conv output)

    # --- SEKG: depthwise 3x3 spatial attention + channel-attention bias -------
    sekg = bias_ref[0, :, :] + yp_ref[0, 0, :, :] * wsa_ref[0, :, :]
    for k in range(1, kk):
        sekg = sekg + yp_ref[0, k, :, :] * wsa_ref[k, :, :]

    # --- AFG per-pixel filters + dynamic filtering -----------------------------
    dy = None
    for k in range(kk):
        filt_k = jnp.dot(wafg_ref[k, :, :], sekg,
                         preferred_element_type=jnp.float32) + bafg_ref[k, :, :]
        term = yp_ref[0, k, :, :] * filt_k
        dy = term if dy is None else dy + term

    # --- LeakyReLU(0.2) ---------------------------------------------------------
    o_ref[0, :, :] = jnp.where(dy >= 0, dy, 0.2 * dy).astype(o_ref.dtype)


# ----------------------------------------------------------------------------
# pallas_call wrappers
# ----------------------------------------------------------------------------
def _pixel_tile(p):
    # Full P when small (full-dim exception), else a fixed 512-wide lane tile;
    # the ragged last block is handled by pl.cdiv + Pallas masking.
    return p if p <= 512 else 512


def _conv3x3(patches, w_mat, bias, residual=None, *, tp):
    # patches : (N, 9*Cin, P); w_mat : (Cout, 9*Cin); bias : (Cout,)
    # residual: optional (N, Cout, P), fused into the output.
    n, kc, p = patches.shape
    cout = w_mat.shape[0]
    grid = (n, pl.cdiv(p, tp))
    b2d = bias.reshape(cout, 1)

    in_specs = [
        pl.BlockSpec((1, kc, tp), lambda i, j: (i, 0, j)),
        pl.BlockSpec((cout, kc), lambda i, j: (0, 0)),
        pl.BlockSpec((cout, 1), lambda i, j: (0, 0)),
    ]
    args = [patches, w_mat, b2d]
    kernel = _conv_kernel
    extra_bytes = 0
    if residual is not None:
        in_specs.append(pl.BlockSpec((1, cout, tp), lambda i, j: (i, 0, j)))
        args.append(residual)
        kernel = _conv_res_kernel
        extra_bytes = 4 * n * cout * p

    return pl.pallas_call(
        kernel,
        out_shape=jax.ShapeDtypeStruct((n, cout, p), patches.dtype),
        grid_spec=pltpu.PrefetchScalarGridSpec(
            num_scalar_prefetch=0,
            grid=grid,
            in_specs=in_specs,
            out_specs=pl.BlockSpec((1, cout, tp), lambda i, j: (i, 0, j)),
        ),
        compiler_params=pltpu.CompilerParams(
            dimension_semantics=("parallel", "parallel")),
        cost_estimate=pl.CostEstimate(
            flops=2 * n * p * kc * cout,
            transcendentals=0,
            bytes_accessed=4 * (n * kc * p + cout * kc + n * cout * p) + extra_bytes),
    )(*args)


def _dyconv_lrelu(ypatch, wsa, sekg_bias, wafg, bafg, *, tp):
    # ypatch   : (N, 9, C, P)  patches of conv1 output
    # wsa      : (9, C, 1)     depthwise conv_sa weights
    # sekg_bias: (N, C, 1)     conv_sa bias + channel attention term (per batch)
    # wafg     : (9, C, C)     AFG 1x1 conv weights
    # bafg     : (9, C, 1)     AFG bias
    n, kk, c, p = ypatch.shape
    grid = (n, pl.cdiv(p, tp))
    kernel = functools.partial(_dyconv_kernel, kk=kk)
    return pl.pallas_call(
        kernel,
        out_shape=jax.ShapeDtypeStruct((n, c, p), ypatch.dtype),
        grid_spec=pltpu.PrefetchScalarGridSpec(
            num_scalar_prefetch=0,
            grid=grid,
            in_specs=[
                pl.BlockSpec((1, kk, c, tp), lambda i, j: (i, 0, 0, j)),
                pl.BlockSpec((kk, c, 1), lambda i, j: (0, 0, 0)),
                pl.BlockSpec((1, c, 1), lambda i, j: (i, 0, 0)),
                pl.BlockSpec((kk, c, c), lambda i, j: (0, 0, 0)),
                pl.BlockSpec((kk, c, 1), lambda i, j: (0, 0, 0)),
            ],
            out_specs=pl.BlockSpec((1, c, tp), lambda i, j: (i, 0, j)),
        ),
        compiler_params=pltpu.CompilerParams(
            dimension_semantics=("parallel", "parallel")),
        cost_estimate=pl.CostEstimate(
            flops=2 * n * p * kk * c * c + 4 * n * p * kk * c,
            transcendentals=0,
            bytes_accessed=4 * (n * kk * c * p + n * c * p + kk * c * c + 2 * kk * c + n * c)),
    )(ypatch, wsa, sekg_bias, wafg, bafg)


# ----------------------------------------------------------------------------
# JAX glue: patch construction & weight reordering (pure layout work)
# ----------------------------------------------------------------------------
def _patches_flat(x):
    # (N,C,H,W) -> (N, 9*C, H*W); row index = k*C + c, k = ki*3 + kj (pad=1)
    n, c, h, w = x.shape
    xp = jnp.pad(x, ((0, 0), (0, 0), (1, 1), (1, 1)))
    views = [xp[:, :, ki:ki + h, kj:kj + w] for ki in range(3) for kj in range(3)]
    return jnp.stack(views, axis=1).reshape(n, 9 * c, h * w)


def _patches_split(x):
    # (N,C,H,W) -> (N, 9, C, H*W)
    n, c, h, w = x.shape
    xp = jnp.pad(x, ((0, 0), (0, 0), (1, 1), (1, 1)))
    views = [xp[:, :, ki:ki + h, kj:kj + w] for ki in range(3) for kj in range(3)]
    return jnp.stack(views, axis=1).reshape(n, 9, c, h * w)


def _conv_w_mat(wt):
    # (Cout, Cin, 3, 3) -> (Cout, 9*Cin); column index = k*Cin + ci
    cout, cin = wt.shape[0], wt.shape[1]
    return jnp.transpose(wt.reshape(cout, cin, 9), (0, 2, 1)).reshape(cout, 9 * cin)


@jax.jit
def dcb_forward(x, w1, b1, w_sa, b_sa, w_ca, b_ca, w_afg, b_afg, w2, b2):
    n, c, h, w = x.shape
    p = h * w
    tp = _pixel_tile(p)

    # ---- conv1 (3x3, pad 1) --------------------------------------------------
    y1 = _conv3x3(_patches_flat(x), _conv_w_mat(w1), b1, tp=tp)         # (N, C, P)

    # ---- SEKG scalar path: global avg pool + 3-tap Conv1d over channels -------
    pool = jnp.mean(y1, axis=2)                                         # (N, C)
    pp = jnp.pad(pool, ((0, 0), (1, 1)))
    wc = w_ca.reshape(3)
    ca = wc[0] * pp[:, :-2] + wc[1] * pp[:, 1:-1] + wc[2] * pp[:, 2:] + b_ca.reshape(())
    sekg_bias = (ca + b_sa[None, :])[:, :, None]                        # (N, C, 1)

    # ---- fused SEKG(spatial) + AFG + dynamic conv + LeakyReLU ------------------
    ypatch = _patches_split(y1.reshape(n, c, h, w))                     # (N, 9, C, P)
    wsa = jnp.transpose(w_sa[:, 0, :, :].reshape(c, 9), (1, 0))[:, :, None]   # (9, C, 1)
    wafg = jnp.transpose(w_afg[:, :, 0, 0].reshape(c, 9, c), (1, 0, 2))       # (9, C, C)
    bafg = b_afg.reshape(c, 9).T[:, :, None]                                  # (9, C, 1)
    act = _dyconv_lrelu(ypatch, wsa, sekg_bias, wafg, bafg, tp=tp)      # (N, C, P)

    # ---- conv2 (3x3, pad 1) + residual, fused in one kernel --------------------
    out = _conv3x3(_patches_flat(act.reshape(n, c, h, w)), _conv_w_mat(w2), b2,
                   residual=x.reshape(n, c, p), tp=tp)                  # (N, C, P)
    return out.reshape(n, c, h, w)


# ----------------------------------------------------------------------------
# Pure-JAX reference (PyTorch semantics) for the correctness check
# ----------------------------------------------------------------------------
def _dcb_reference(x, w1, b1, w_sa, b_sa, w_ca, b_ca, w_afg, b_afg, w2, b2):
    hi = jax.lax.Precision.HIGHEST

    def conv(inp, wt, b, groups=1, pad=1):
        out = jax.lax.conv_general_dilated(
            inp, wt, window_strides=(1, 1), padding=((pad, pad), (pad, pad)),
            dimension_numbers=("NCHW", "OIHW", "NCHW"),
            feature_group_count=groups, precision=hi)
        return out + b[None, :, None, None]

    n, c, h, w = x.shape
    y1 = conv(x, w1, b1)
    # SEKG
    sa = conv(y1, w_sa, b_sa, groups=c)
    pool = jnp.mean(y1, axis=(2, 3))
    pp = jnp.pad(pool, ((0, 0), (1, 1)))
    wc = w_ca.reshape(3)
    ca = wc[0] * pp[:, :-2] + wc[1] * pp[:, 1:-1] + wc[2] * pp[:, 2:] + b_ca.reshape(())
    sekg = sa + ca[:, :, None, None]
    # AFG: 1x1 conv C -> 9C, reshape to (N, C, 9, H, W)
    filt = conv(sekg, w_afg, b_afg, pad=0).reshape(n, c, 9, h, w)
    # DyConv: unfold(y1) * filt summed over the 9 kernel positions
    y1p = jnp.pad(y1, ((0, 0), (0, 0), (1, 1), (1, 1)))
    unf = jnp.stack([y1p[:, :, ki:ki + h, kj:kj + w]
                     for ki in range(3) for kj in range(3)], axis=2)   # (N, C, 9, H, W)
    dy = (unf * filt).sum(axis=2)
    act = jnp.where(dy >= 0, dy, 0.2 * dy)
    y2 = conv(act, w2, b2)
    return x + y2


if __name__ == "__main__":
    N, C, H, W = 2, 4, 16, 16
    key = jax.random.PRNGKey(0)
    ks = jax.random.split(key, 11)
    s = 0.1
    w1 = jax.random.normal(ks[0], (C, C, 3, 3), jnp.float32) * s
    b1 = jax.random.normal(ks[1], (C,), jnp.float32) * s
    w_sa = jax.random.normal(ks[2], (C, 1, 3, 3), jnp.float32) * s
    b_sa = jax.random.normal(ks[3], (C,), jnp.float32) * s
    w_ca = jax.random.normal(ks[4], (1, 1, 3), jnp.float32) * s
    b_ca = jax.random.normal(ks[5], (1,), jnp.float32) * s
    w_afg = jax.random.normal(ks[6], (C * 9, C, 1, 1), jnp.float32) * s
    b_afg = jax.random.normal(ks[7], (C * 9,), jnp.float32) * s
    w2 = jax.random.normal(ks[8], (C, C, 3, 3), jnp.float32) * s
    b2 = jax.random.normal(ks[9], (C,), jnp.float32) * s
    x = jax.random.normal(ks[10], (N, C, H, W), jnp.float32)

    out = dcb_forward(x, w1, b1, w_sa, b_sa, w_ca, b_ca, w_afg, b_afg, w2, b2)
    out = jax.block_until_ready(out)

    ref = _dcb_reference(x, w1, b1, w_sa, b_sa, w_ca, b_ca, w_afg, b_afg, w2, b2)
    assert out.shape == x.shape, (out.shape, x.shape)
    max_err = float(jnp.max(jnp.abs(out - ref)))
    # tolerance absorbs MXU multi-pass f32 vs XLA conv precision differences;
    # any structural/ordering bug produces O(0.1-1) errors and is still caught.
    assert jnp.allclose(out, ref, atol=1e-2, rtol=1e-2), max_err

    print("KERNEL_OK")
</pallas_src>

<mosaic_0001>
module attributes {stable_mosaic.version = 11 : i64} {
  func.func @_conv_kernel(%arg0: i32, %arg1: i32, %arg2: memref<1x36x256xf32, #tpu.memory_space<vmem>>, %arg3: memref<4x36xf32, #tpu.memory_space<vmem>>, %arg4: memref<4x1xf32, #tpu.memory_space<vmem>>, %arg5: memref<1x4x256xf32, #tpu.memory_space<vmem>>) attributes {dimension_semantics = [#tpu.dimension_semantics<parallel>, #tpu.dimension_semantics<parallel>], iteration_bounds = array<i64: 2, 1>, scalar_prefetch = 0 : i64, scratch_operands = 0 : i64, tpu.core_type = #tpu.core_type<tc>, window_params = [{transform_indices = @transform_0, window_bounds = array<i64: 1, 36, 256>}, {pipeline_mode = #tpu.pipeline_mode<synchronous>, transform_indices = @transform_1, window_bounds = array<i64: 4, 36>}, {pipeline_mode = #tpu.pipeline_mode<synchronous>, transform_indices = @transform_2, window_bounds = array<i64: 4, 1>}, {transform_indices = @transform_3, window_bounds = array<i64: 1, 4, 256>}]} {
    %c0 = arith.constant 0 : index
    %c0_0 = arith.constant 0 : index
    %0 = vector.load %arg3[%c0, %c0_0] : memref<4x36xf32, #tpu.memory_space<vmem>>, vector<4x36xf32>
    %c0_1 = arith.constant 0 : index
    %c0_2 = arith.constant 0 : index
    %c0_3 = arith.constant 0 : index
    %1 = vector.load %arg2[%c0_1, %c0_2, %c0_3] : memref<1x36x256xf32, #tpu.memory_space<vmem>>, vector<1x36x256xf32>
    %2 = vector.shape_cast %1 : vector<1x36x256xf32> to vector<36x256xf32>
    %cst = arith.constant dense<0.000000e+00> : vector<4x256xf32>
    %3 = tpu.matmul %0, %2, %cst {dimension_numbers = #tpu.dot_dimension_numbers<[1], [0], [0], [1], [0, 0, 1, 1], [], []>} : vector<4x36xf32>, vector<36x256xf32>, vector<4x256xf32> -> vector<4x256xf32>
    %c0_4 = arith.constant 0 : index
    %c0_5 = arith.constant 0 : index
    %4 = vector.load %arg4[%c0_4, %c0_5] : memref<4x1xf32, #tpu.memory_space<vmem>>, vector<4x1xf32>
    %5 = vector.broadcast %4 : vector<4x1xf32> to vector<4x256xf32>
    %6 = arith.addf %3, %5 : vector<4x256xf32>
    %c0_6 = arith.constant 0 : index
    %c0_7 = arith.constant 0 : index
    %c0_8 = arith.constant 0 : index
    %7 = vector.load %arg5[%c0_6, %c0_7, %c0_8] : memref<1x4x256xf32, #tpu.memory_space<vmem>>, vector<1x4x256xf32>
    %8 = vector.shape_cast %7 : vector<1x4x256xf32> to vector<4x256xf32>
    %9 = vector.shape_cast %6 : vector<4x256xf32> to vector<1x4x256xf32>
    tpu.vector_store %arg5[%c0_6, %c0_7, %c0_8], %9 {strides = array<i32>} : memref<1x4x256xf32, #tpu.memory_space<vmem>>, vector<1x4x256xf32>,
    return
  }
  func.func @transform_0(%arg0: i32, %arg1: i32) -> (i32, i32, i32) {
    %c0_i32 = arith.constant 0 : i32
    %c0_i32_0 = arith.constant 0 : i32
    return %arg0, %c0_i32, %arg1 : i32, i32, i32
  }
  func.func @transform_1(%arg0: i32, %arg1: i32) -> (i32, i32) {
    %c0_i32 = arith.constant 0 : i32
    %c0_i32_0 = arith.constant 0 : i32
    %c0_i32_1 = arith.constant 0 : i32
    return %c0_i32, %c0_i32_0 : i32, i32
  }
  func.func @transform_2(%arg0: i32, %arg1: i32) -> (i32, i32) {
    %c0_i32 = arith.constant 0 : i32
    %c0_i32_0 = arith.constant 0 : i32
    %c0_i32_1 = arith.constant 0 : i32
    return %c0_i32, %c0_i32_0 : i32, i32
  }
  func.func @transform_3(%arg0: i32, %arg1: i32) -> (i32, i32, i32) {
    %c0_i32 = arith.constant 0 : i32
    %c0_i32_0 = arith.constant 0 : i32
    return %arg0, %c0_i32, %arg1 : i32, i32, i32
  }
}

module attributes {stable_mosaic.version = 11 : i64} {
  func.func @_dyconv_kernel(%arg0: i32, %arg1: i32, %arg2: memref<1x9x4x256xf32, #tpu.memory_space<vmem>>, %arg3: memref<9x4x1xf32, #tpu.memory_space<vmem>>, %arg4: memref<1x4x1xf32, #tpu.memory_space<vmem>>, %arg5: memref<9x4x4xf32, #tpu.memory_space<vmem>>, %arg6: memref<9x4x1xf32, #tpu.memory_space<vmem>>, %arg7: memref<1x4x256xf32, #tpu.memory_space<vmem>>) attributes {dimension_semantics = [#tpu.dimension_semantics<parallel>, #tpu.dimension_semantics<parallel>], iteration_bounds = array<i64: 2, 1>, scalar_prefetch = 0 : i64, scratch_operands = 0 : i64, tpu.core_type = #tpu.core_type<tc>, window_params = [{transform_indices = @transform_0, window_bounds = array<i64: 1, 9, 4, 256>}, {pipeline_mode = #tpu.pipeline_mode<synchronous>, transform_indices = @transform_1, window_bounds = array<i64: 9, 4, 1>}, {transform_indices = @transform_2, window_bounds = array<i64: 1, 4, 1>}, {pipeline_mode = #tpu.pipeline_mode<synchronous>, transform_indices = @transform_3, window_bounds = array<i64: 9, 4, 4>}, {pipeline_mode = #tpu.pipeline_mode<synchronous>, transform_indices = @transform_4, window_bounds = array<i64: 9, 4, 1>}, {transform_indices = @transform_5, window_bounds = array<i64: 1, 4, 256>}]} {
    %c0 = arith.constant 0 : index
    %c0_0 = arith.constant 0 : index
    %c0_1 = arith.constant 0 : index
    %0 = vector.load %arg4[%c0, %c0_0, %c0_1] : memref<1x4x1xf32, #tpu.memory_space<vmem>>, vector<1x4x1xf32>
    %1 = vector.shape_cast %0 : vector<1x4x1xf32> to vector<4x1xf32>
    %c0_2 = arith.constant 0 : index
    %c0_3 = arith.constant 0 : index
    %c0_4 = arith.constant 0 : index
    %c0_5 = arith.constant 0 : index
    %2 = vector.load %arg2[%c0_2, %c0_3, %c0_4, %c0_5] : memref<1x9x4x256xf32, #tpu.memory_space<vmem>>, vector<1x1x4x256xf32>
    %3 = vector.shape_cast %2 : vector<1x1x4x256xf32> to vector<4x256xf32>
    %c0_6 = arith.constant 0 : index
    %c0_7 = arith.constant 0 : index
    %c0_8 = arith.constant 0 : index
    %4 = vector.load %arg3[%c0_6, %c0_7, %c0_8] : memref<9x4x1xf32, #tpu.memory_space<vmem>>, vector<1x4x1xf32>
    %5 = vector.shape_cast %4 : vector<1x4x1xf32> to vector<4x1xf32>
    %6 = vector.broadcast %5 : vector<4x1xf32> to vector<4x256xf32>
    %7 = arith.mulf %3, %6 : vector<4x256xf32>
    %8 = vector.broadcast %1 : vector<4x1xf32> to vector<4x256xf32>
    %9 = arith.addf %8, %7 : vector<4x256xf32>
    %c0_9 = arith.constant 0 : index
    %c1 = arith.constant 1 : index
    %c0_10 = arith.constant 0 : index
    %c0_11 = arith.constant 0 : index
    %10 = vector.load %arg2[%c0_9, %c1, %c0_10, %c0_11] : memref<1x9x4x256xf32, #tpu.memory_space<vmem>>, vector<1x1x4x256xf32>
    %11 = vector.shape_cast %10 : vector<1x1x4x256xf32> to vector<4x256xf32>
    %c1_12 = arith.constant 1 : index
    %c0_13 = arith.constant 0 : index
    %c0_14 = arith.constant 0 : index
    %12 = vector.load %arg3[%c1_12, %c0_13, %c0_14] : memref<9x4x1xf32, #tpu.memory_space<vmem>>, vector<1x4x1xf32>
    %13 = vector.shape_cast %12 : vector<1x4x1xf32> to vector<4x1xf32>
    %14 = vector.broadcast %13 : vector<4x1xf32> to vector<4x256xf32>
    %15 = arith.mulf %11, %14 : vector<4x256xf32>
    %16 = arith.addf %9, %15 : vector<4x256xf32>
    %c0_15 = arith.constant 0 : index
    %c2 = arith.constant 2 : index
    %c0_16 = arith.constant 0 : index
    %c0_17 = arith.constant 0 : index
    %17 = vector.load %arg2[%c0_15, %c2, %c0_16, %c0_17] : memref<1x9x4x256xf32, #tpu.memory_space<vmem>>, vector<1x1x4x256xf32>
    %18 = vector.shape_cast %17 : vector<1x1x4x256xf32> to vector<4x256xf32>
    %c2_18 = arith.constant 2 : index
    %c0_19 = arith.constant 0 : index
    %c0_20 = arith.constant 0 : index
    %19 = vector.load %arg3[%c2_18, %c0_19, %c0_20] : memref<9x4x1xf32, #tpu.memory_space<vmem>>, vector<1x4x1xf32>
    %20 = vector.shape_cast %19 : vector<1x4x1xf32> to vector<4x1xf32>
    %21 = vector.broadcast %20 : vector<4x1xf32> to vector<4x256xf32>
    %22 = arith.mulf %18, %21 : vector<4x256xf32>
    %23 = arith.addf %16, %22 : vector<4x256xf32>
    %c0_21 = arith.constant 0 : index
    %c3 = arith.constant 3 : index
    %c0_22 = arith.constant 0 : index
    %c0_23 = arith.constant 0 : index
    %24 = vector.load %arg2[%c0_21, %c3, %c0_22, %c0_23] : memref<1x9x4x256xf32, #tpu.memory_space<vmem>>, vector<1x1x4x256xf32>
    %25 = vector.shape_cast %24 : vector<1x1x4x256xf32> to vector<4x256xf32>
    %c3_24 = arith.constant 3 : index
    %c0_25 = arith.constant 0 : index
    %c0_26 = arith.constant 0 : index
    %26 = vector.load %arg3[%c3_24, %c0_25, %c0_26] : memref<9x4x1xf32, #tpu.memory_space<vmem>>, vector<1x4x1xf32>
    %27 = vector.shape_cast %26 : vector<1x4x1xf32> to vector<4x1xf32>
    %28 = vector.broadcast %27 : vector<4x1xf32> to vector<4x256xf32>
    %29 = arith.mulf %25, %28 : vector<4x256xf32>
    %30 = arith.addf %23, %29 : vector<4x256xf32>
    %c0_27 = arith.constant 0 : index
    %c4 = arith.constant 4 : index
    %c0_28 = arith.constant 0 : index
    %c0_29 = arith.constant 0 : index
    %31 = vector.load %arg2[%c0_27, %c4, %c0_28, %c0_29] : memref<1x9x4x256xf32, #tpu.memory_space<vmem>>, vector<1x1x4x256xf32>
    %32 = vector.shape_cast %31 : vector<1x1x4x256xf32> to vector<4x256xf32>
    %c4_30 = arith.constant 4 : index
    %c0_31 = arith.constant 0 : index
    %c0_32 = arith.constant 0 : index
    %33 = vector.load %arg3[%c4_30, %c0_31, %c0_32] : memref<9x4x1xf32, #tpu.memory_space<vmem>>, vector<1x4x1xf32>
    %34 = vector.shape_cast %33 : vector<1x4x1xf32> to vector<4x1xf32>
    %35 = vector.broadcast %34 : vector<4x1xf32> to vector<4x256xf32>
    %36 = arith.mulf %32, %35 : vector<4x256xf32>
    %37 = arith.addf %30, %36 : vector<4x256xf32>
    %c0_33 = arith.constant 0 : index
    %c5 = arith.constant 5 : index
    %c0_34 = arith.constant 0 : index
    %c0_35 = arith.constant 0 : index
    %38 = vector.load %arg2[%c0_33, %c5, %c0_34, %c0_35] : memref<1x9x4x256xf32, #tpu.memory_space<vmem>>, vector<1x1x4x256xf32>
    %39 = vector.shape_cast %38 : vector<1x1x4x256xf32> to vector<4x256xf32>
    %c5_36 = arith.constant 5 : index
    %c0_37 = arith.constant 0 : index
    %c0_38 = arith.constant 0 : index
    %40 = vector.load %arg3[%c5_36, %c0_37, %c0_38] : memref<9x4x1xf32, #tpu.memory_space<vmem>>, vector<1x4x1xf32>
    %41 = vector.shape_cast %40 : vector<1x4x1xf32> to vector<4x1xf32>
    %42 = vector.broadcast %41 : vector<4x1xf32> to vector<4x256xf32>
    %43 = arith.mulf %39, %42 : vector<4x256xf32>
    %44 = arith.addf %37, %43 : vector<4x256xf32>
    %c0_39 = arith.constant 0 : index
    %c6 = arith.constant 6 : index
    %c0_40 = arith.constant 0 : index
    %c0_41 = arith.constant 0 : index
    %45 = vector.load %arg2[%c0_39, %c6, %c0_40, %c0_41] : memref<1x9x4x256xf32, #tpu.memory_space<vmem>>, vector<1x1x4x256xf32>
    %46 = vector.shape_cast %45 : vector<1x1x4x256xf32> to vector<4x256xf32>
    %c6_42 = arith.constant 6 : index
    %c0_43 = arith.constant 0 : index
    %c0_44 = arith.constant 0 : index
    %47 = vector.load %arg3[%c6_42, %c0_43, %c0_44] : memref<9x4x1xf32, #tpu.memory_space<vmem>>, vector<1x4x1xf32>
    %48 = vector.shape_cast %47 : vector<1x4x1xf32> to vector<4x1xf32>
    %49 = vector.broadcast %48 : vector<4x1xf32> to vector<4x256xf32>
    %50 = arith.mulf %46, %49 : vector<4x256xf32>
    %51 = arith.addf %44, %50 : vector<4x256xf32>
    %c0_45 = arith.constant 0 : index
    %c7 = arith.constant 7 : index
    %c0_46 = arith.constant 0 : index
    %c0_47 = arith.constant 0 : index
    %52 = vector.load %arg2[%c0_45, %c7, %c0_46, %c0_47] : memref<1x9x4x256xf32, #tpu.memory_space<vmem>>, vector<1x1x4x256xf32>
    %53 = vector.shape_cast %52 : vector<1x1x4x256xf32> to vector<4x256xf32>
    %c7_48 = arith.constant 7 : index
    %c0_49 = arith.constant 0 : index
    %c0_50 = arith.constant 0 : index
    %54 = vector.load %arg3[%c7_48, %c0_49, %c0_50] : memref<9x4x1xf32, #tpu.memory_space<vmem>>, vector<1x4x1xf32>
    %55 = vector.shape_cast %54 : vector<1x4x1xf32> to vector<4x1xf32>
    %56 = vector.broadcast %55 : vector<4x1xf32> to vector<4x256xf32>
    %57 = arith.mulf %53, %56 : vector<4x256xf32>
    %58 = arith.addf %51, %57 : vector<4x256xf32>
    %c0_51 = arith.constant 0 : index
    %c8 = arith.constant 8 : index
    %c0_52 = arith.constant 0 : index
    %c0_53 = arith.constant 0 : index
    %59 = vector.load %arg2[%c0_51, %c8, %c0_52, %c0_53] : memref<1x9x4x256xf32, #tpu.memory_space<vmem>>, vector<1x1x4x256xf32>
    %60 = vector.shape_cast %59 : vector<1x1x4x256xf32> to vector<4x256xf32>
    %c8_54 = arith.constant 8 : index
    %c0_55 = arith.constant 0 : index
    %c0_56 = arith.constant 0 : index
    %61 = vector.load %arg3[%c8_54, %c0_55, %c0_56] : memref<9x4x1xf32, #tpu.memory_space<vmem>>, vector<1x4x1xf32>
    %62 = vector.shape_cast %61 : vector<1x4x1xf32> to vector<4x1xf32>
    %63 = vector.broadcast %62 : vector<4x1xf32> to vector<4x256xf32>
    %64 = arith.mulf %60, %63 : vector<4x256xf32>
    %65 = arith.addf %58, %64 : vector<4x256xf32>
    %c0_57 = arith.constant 0 : index
    %c0_58 = arith.constant 0 : index
    %c0_59 = arith.constant 0 : index
    %66 = vector.load %arg5[%c0_57, %c0_58, %c0_59] : memref<9x4x4xf32, #tpu.memory_space<vmem>>, vector<1x4x4xf32>
    %67 = vector.shape_cast %66 : vector<1x4x4xf32> to vector<4x4xf32>
    %cst = arith.constant dense<0.000000e+00> : vector<4x256xf32>
    %68 = tpu.matmul %67, %65, %cst {dimension_numbers = #tpu.dot_dimension_numbers<[1], [0], [0], [1], [0, 0, 1, 1], [], []>} : vector<4x4xf32>, vector<4x256xf32>, vector<4x256xf32> -> vector<4x256xf32>
    %c0_60 = arith.constant 0 : index
    %c0_61 = arith.constant 0 : index
    %c0_62 = arith.constant 0 : index
    %69 = vector.load %arg6[%c0_60, %c0_61, %c0_62] : memref<9x4x1xf32, #tpu.memory_space<vmem>>, vector<1x4x1xf32>
    %70 = vector.shape_cast %69 : vector<1x4x1xf32> to vector<4x1xf32>
    %71 = vector.broadcast %70 : vector<4x1xf32> to vector<4x256xf32>
    %72 = arith.addf %68, %71 : vector<4x256xf32>
    %c0_63 = arith.constant 0 : index
    %c0_64 = arith.constant 0 : index
    %c0_65 = arith.constant 0 : index
    %c0_66 = arith.constant 0 : index
    %73 = vector.load %arg2[%c0_63, %c0_64, %c0_65, %c0_66] : memref<1x9x4x256xf32, #tpu.memory_space<vmem>>, vector<1x1x4x256xf32>
    %74 = vector.shape_cast %73 : vector<1x1x4x256xf32> to vector<4x256xf32>
    %75 = arith.mulf %74, %72 : vector<4x256xf32>
    %c1_67 = arith.constant 1 : index
    %c0_68 = arith.constant 0 : index
    %c0_69 = arith.constant 0 : index
    %76 = vector.load %arg5[%c1_67, %c0_68, %c0_69] : memref<9x4x4xf32, #tpu.memory_space<vmem>>, vector<1x4x4xf32>
    %77 = vector.shape_cast %76 : vector<1x4x4xf32> to vector<4x4xf32>
    %cst_70 = arith.constant dense<0.000000e+00> : vector<4x256xf32>
    %78 = tpu.matmul %77, %65, %cst_70 {dimension_numbers = #tpu.dot_dimension_numbers<[1], [0], [0], [1], [0, 0, 1, 1], [], []>} : vector<4x4xf32>, vector<4x256xf32>, vector<4x256xf32> -> vector<4x256xf32>
    %c1_71 = arith.constant 1 : index
    %c0_72 = arith.constant 0 : index
    %c0_73 = arith.constant 0 : index
    %79 = vector.load %arg6[%c1_71, %c0_72, %c0_73] : memref<9x4x1xf32, #tpu.memory_space<vmem>>, vector<1x4x1xf32>
    %80 = vector.shape_cast %79 : vector<1x4x1xf32> to vector<4x1xf32>
    %81 = vector.broadcast %80 : vector<4x1xf32> to vector<4x256xf32>
    %82 = arith.addf %78, %81 : vector<4x256xf32>
    %c0_74 = arith.constant 0 : index
    %c1_75 = arith.constant 1 : index
    %c0_76 = arith.constant 0 : index
    %c0_77 = arith.constant 0 : index
    %83 = vector.load %arg2[%c0_74, %c1_75, %c0_76, %c0_77] : memref<1x9x4x256xf32, #tpu.memory_space<vmem>>, vector<1x1x4x256xf32>
    %84 = vector.shape_cast %83 : vector<1x1x4x256xf32> to vector<4x256xf32>
    %85 = arith.mulf %84, %82 : vector<4x256xf32>
    %86 = arith.addf %75, %85 : vector<4x256xf32>
    %c2_78 = arith.constant 2 : index
    %c0_79 = arith.constant 0 : index
    %c0_80 = arith.constant 0 : index
    %87 = vector.load %arg5[%c2_78, %c0_79, %c0_80] : memref<9x4x4xf32, #tpu.memory_space<vmem>>, vector<1x4x4xf32>
    %88 = vector.shape_cast %87 : vector<1x4x4xf32> to vector<4x4xf32>
    %cst_81 = arith.constant dense<0.000000e+00> : vector<4x256xf32>
    %89 = tpu.matmul %88, %65, %cst_81 {dimension_numbers = #tpu.dot_dimension_numbers<[1], [0], [0], [1], [0, 0, 1, 1], [], []>} : vector<4x4xf32>, vector<4x256xf32>, vector<4x256xf32> -> vector<4x256xf32>
    %c2_82 = arith.constant 2 : index
    %c0_83 = arith.constant 0 : index
    %c0_84 = arith.constant 0 : index
    %90 = vector.load %arg6[%c2_82, %c0_83, %c0_84] : memref<9x4x1xf32, #tpu.memory_space<vmem>>, vector<1x4x1xf32>
    %91 = vector.shape_cast %90 : vector<1x4x1xf32> to vector<4x1xf32>
    %92 = vector.broadcast %91 : vector<4x1xf32> to vector<4x256xf32>
    %93 = arith.addf %89, %92 : vector<4x256xf32>
    %c0_85 = arith.constant 0 : index
    %c2_86 = arith.constant 2 : index
    %c0_87 = arith.constant 0 : index
    %c0_88 = arith.constant 0 : index
    %94 = vector.load %arg2[%c0_85, %c2_86, %c0_87, %c0_88] : memref<1x9x4x256xf32, #tpu.memory_space<vmem>>, vector<1x1x4x256xf32>
    %95 = vector.shape_cast %94 : vector<1x1x4x256xf32> to vector<4x256xf32>
    %96 = arith.mulf %95, %93 : vector<4x256xf32>
    %97 = arith.addf %86, %96 : vector<4x256xf32>
    %c3_89 = arith.constant 3 : index
    %c0_90 = arith.constant 0 : index
    %c0_91 = arith.constant 0 : index
    %98 = vector.load %arg5[%c3_89, %c0_90, %c0_91] : memref<9x4x4xf32, #tpu.memory_space<vmem>>, vector<1x4x4xf32>
    %99 = vector.shape_cast %98 : vector<1x4x4xf32> to vector<4x4xf32>
    %cst_92 = arith.constant dense<0.000000e+00> : vector<4x256xf32>
    %100 = tpu.matmul %99, %65, %cst_92 {dimension_numbers = #tpu.dot_dimension_numbers<[1], [0], [0], [1], [0, 0, 1, 1], [], []>} : vector<4x4xf32>, vector<4x256xf32>, vector<4x256xf32> -> vector<4x256xf32>
    %c3_93 = arith.constant 3 : index
    %c0_94 = arith.constant 0 : index
    %c0_95 = arith.constant 0 : index
    %101 = vector.load %arg6[%c3_93, %c0_94, %c0_95] : memref<9x4x1xf32, #tpu.memory_space<vmem>>, vector<1x4x1xf32>
    %102 = vector.shape_cast %101 : vector<1x4x1xf32> to vector<4x1xf32>
    %103 = vector.broadcast %102 : vector<4x1xf32> to vector<4x256xf32>
    %104 = arith.addf %100, %103 : vector<4x256xf32>
    %c0_96 = arith.constant 0 : index
    %c3_97 = arith.constant 3 : index
    %c0_98 = arith.constant 0 : index
    %c0_99 = arith.constant 0 : index
    %105 = vector.load %arg2[%c0_96, %c3_97, %c0_98, %c0_99] : memref<1x9x4x256xf32, #tpu.memory_space<vmem>>, vector<1x1x4x256xf32>
    %106 = vector.shape_cast %105 : vector<1x1x4x256xf32> to vector<4x256xf32>
    %107 = arith.mulf %106, %104 : vector<4x256xf32>
    %108 = arith.addf %97, %107 : vector<4x256xf32>
    %c4_100 = arith.constant 4 : index
    %c0_101 = arith.constant 0 : index
    %c0_102 = arith.constant 0 : index
    %109 = vector.load %arg5[%c4_100, %c0_101, %c0_102] : memref<9x4x4xf32, #tpu.memory_space<vmem>>, vector<1x4x4xf32>
    %110 = vector.shape_cast %109 : vector<1x4x4xf32> to vector<4x4xf32>
    %cst_103 = arith.constant dense<0.000000e+00> : vector<4x256xf32>
    %111 = tpu.matmul %110, %65, %cst_103 {dimension_numbers = #tpu.dot_dimension_numbers<[1], [0], [0], [1], [0, 0, 1, 1], [], []>} : vector<4x4xf32>, vector<4x256xf32>, vector<4x256xf32> -> vector<4x256xf32>
    %c4_104 = arith.constant 4 : index
    %c0_105 = arith.constant 0 : index
    %c0_106 = arith.constant 0 : index
    %112 = vector.load %arg6[%c4_104, %c0_105, %c0_106] : memref<9x4x1xf32, #tpu.memory_space<vmem>>, vector<1x4x1xf32>
    %113 = vector.shape_cast %112 : vector<1x4x1xf32> to vector<4x1xf32>
    %114 = vector.broadcast %113 : vector<4x1xf32> to vector<4x256xf32>
    %115 = arith.addf %111, %114 : vector<4x256xf32>
    %c0_107 = arith.constant 0 : index
    %c4_108 = arith.constant 4 : index
    %c0_109 = arith.constant 0 : index
    %c0_110 = arith.constant 0 : index
    %116 = vector.load %arg2[%c0_107, %c4_108, %c0_109, %c0_110] : memref<1x9x4x256xf32, #tpu.memory_space<vmem>>, vector<1x1x4x256xf32>
    %117 = vector.shape_cast %116 : vector<1x1x4x256xf32> to vector<4x256xf32>
    %118 = arith.mulf %117, %115 : vector<4x256xf32>
    %119 = arith.addf %108, %118 : vector<4x256xf32>
    %c5_111 = arith.constant 5 : index
    %c0_112 = arith.constant 0 : index
    %c0_113 = arith.constant 0 : index
    %120 = vector.load %arg5[%c5_111, %c0_112, %c0_113] : memref<9x4x4xf32, #tpu.memory_space<vmem>>, vector<1x4x4xf32>
    %121 = vector.shape_cast %120 : vector<1x4x4xf32> to vector<4x4xf32>
    %cst_114 = arith.constant dense<0.000000e+00> : vector<4x256xf32>
    %122 = tpu.matmul %121, %65, %cst_114 {dimension_numbers = #tpu.dot_dimension_numbers<[1], [0], [0], [1], [0, 0, 1, 1], [], []>} : vector<4x4xf32>, vector<4x256xf32>, vector<4x256xf32> -> vector<4x256xf32>
    %c5_115 = arith.constant 5 : index
    %c0_116 = arith.constant 0 : index
    %c0_117 = arith.constant 0 : index
    %123 = vector.load %arg6[%c5_115, %c0_116, %c0_117] : memref<9x4x1xf32, #tpu.memory_space<vmem>>, vector<1x4x1xf32>
    %124 = vector.shape_cast %123 : vector<1x4x1xf32> to vector<4x1xf32>
    %125 = vector.broadcast %124 : vector<4x1xf32> to vector<4x256xf32>
    %126 = arith.addf %122, %125 : vector<4x256xf32>
    %c0_118 = arith.constant 0 : index
    %c5_119 = arith.constant 5 : index
    %c0_120 = arith.constant 0 : index
    %c0_121 = arith.constant 0 : index
    %127 = vector.load %arg2[%c0_118, %c5_119, %c0_120, %c0_121] : memref<1x9x4x256xf32, #tpu.memory_space<vmem>>, vector<1x1x4x256xf32>
    %128 = vector.shape_cast %127 : vector<1x1x4x256xf32> to vector<4x256xf32>
    %129 = arith.mulf %128, %126 : vector<4x256xf32>
    %130 = arith.addf %119, %129 : vector<4x256xf32>
    %c6_122 = arith.constant 6 : index
    %c0_123 = arith.constant 0 : index
    %c0_124 = arith.constant 0 : index
    %131 = vector.load %arg5[%c6_122, %c0_123, %c0_124] : memref<9x4x4xf32, #tpu.memory_space<vmem>>, vector<1x4x4xf32>
    %132 = vector.shape_cast %131 : vector<1x4x4xf32> to vector<4x4xf32>
    %cst_125 = arith.constant dense<0.000000e+00> : vector<4x256xf32>
    %133 = tpu.matmul %132, %65, %cst_125 {dimension_numbers = #tpu.dot_dimension_numbers<[1], [0], [0], [1], [0, 0, 1, 1], [], []>} : vector<4x4xf32>, vector<4x256xf32>, vector<4x256xf32> -> vector<4x256xf32>
    %c6_126 = arith.constant 6 : index
    %c0_127 = arith.constant 0 : index
    %c0_128 = arith.constant 0 : index
    %134 = vector.load %arg6[%c6_126, %c0_127, %c0_128] : memref<9x4x1xf32, #tpu.memory_space<vmem>>, vector<1x4x1xf32>
    %135 = vector.shape_cast %134 : vector<1x4x1xf32> to vector<4x1xf32>
    %136 = vector.broadcast %135 : vector<4x1xf32> to vector<4x256xf32>
    %137 = arith.addf %133, %136 : vector<4x256xf32>
    %c0_129 = arith.constant 0 : index
    %c6_130 = arith.constant 6 : index
    %c0_131 = arith.constant 0 : index
    %c0_132 = arith.constant 0 : index
    %138 = vector.load %arg2[%c0_129, %c6_130, %c0_131, %c0_132] : memref<1x9x4x256xf32, #tpu.memory_space<vmem>>, vector<1x1x4x256xf32>
    %139 = vector.shape_cast %138 : vector<1x1x4x256xf32> to vector<4x256xf32>
    %140 = arith.mulf %139, %137 : vector<4x256xf32>
    %141 = arith.addf %130, %140 : vector<4x256xf32>
    %c7_133 = arith.constant 7 : index
    %c0_134 = arith.constant 0 : index
    %c0_135 = arith.constant 0 : index
    %142 = vector.load %arg5[%c7_133, %c0_134, %c0_135] : memref<9x4x4xf32, #tpu.memory_space<vmem>>, vector<1x4x4xf32>
    %143 = vector.shape_cast %142 : vector<1x4x4xf32> to vector<4x4xf32>
    %cst_136 = arith.constant dense<0.000000e+00> : vector<4x256xf32>
    %144 = tpu.matmul %143, %65, %cst_136 {dimension_numbers = #tpu.dot_dimension_numbers<[1], [0], [0], [1], [0, 0, 1, 1], [], []>} : vector<4x4xf32>, vector<4x256xf32>, vector<4x256xf32> -> vector<4x256xf32>
    %c7_137 = arith.constant 7 : index
    %c0_138 = arith.constant 0 : index
    %c0_139 = arith.constant 0 : index
    %145 = vector.load %arg6[%c7_137, %c0_138, %c0_139] : memref<9x4x1xf32, #tpu.memory_space<vmem>>, vector<1x4x1xf32>
    %146 = vector.shape_cast %145 : vector<1x4x1xf32> to vector<4x1xf32>
    %147 = vector.broadcast %146 : vector<4x1xf32> to vector<4x256xf32>
    %148 = arith.addf %144, %147 : vector<4x256xf32>
    %c0_140 = arith.constant 0 : index
    %c7_141 = arith.constant 7 : index
    %c0_142 = arith.constant 0 : index
    %c0_143 = arith.constant 0 : index
    %149 = vector.load %arg2[%c0_140, %c7_141, %c0_142, %c0_143] : memref<1x9x4x256xf32, #tpu.memory_space<vmem>>, vector<1x1x4x256xf32>
    %150 = vector.shape_cast %149 : vector<1x1x4x256xf32> to vector<4x256xf32>
    %151 = arith.mulf %150, %148 : vector<4x256xf32>
    %152 = arith.addf %141, %151 : vector<4x256xf32>
    %c8_144 = arith.constant 8 : index
    %c0_145 = arith.constant 0 : index
    %c0_146 = arith.constant 0 : index
    %153 = vector.load %arg5[%c8_144, %c0_145, %c0_146] : memref<9x4x4xf32, #tpu.memory_space<vmem>>, vector<1x4x4xf32>
    %154 = vector.shape_cast %153 : vector<1x4x4xf32> to vector<4x4xf32>
    %cst_147 = arith.constant dense<0.000000e+00> : vector<4x256xf32>
    %155 = tpu.matmul %154, %65, %cst_147 {dimension_numbers = #tpu.dot_dimension_numbers<[1], [0], [0], [1], [0, 0, 1, 1], [], []>} : vector<4x4xf32>, vector<4x256xf32>, vector<4x256xf32> -> vector<4x256xf32>
    %c8_148 = arith.constant 8 : index
    %c0_149 = arith.constant 0 : index
    %c0_150 = arith.constant 0 : index
    %156 = vector.load %arg6[%c8_148, %c0_149, %c0_150] : memref<9x4x1xf32, #tpu.memory_space<vmem>>, vector<1x4x1xf32>
    %157 = vector.shape_cast %156 : vector<1x4x1xf32> to vector<4x1xf32>
    %158 = vector.broadcast %157 : vector<4x1xf32> to vector<4x256xf32>
    %159 = arith.addf %155, %158 : vector<4x256xf32>
    %c0_151 = arith.constant 0 : index
    %c8_152 = arith.constant 8 : index
    %c0_153 = arith.constant 0 : index
    %c0_154 = arith.constant 0 : index
    %160 = vector.load %arg2[%c0_151, %c8_152, %c0_153, %c0_154] : memref<1x9x4x256xf32, #tpu.memory_space<vmem>>, vector<1x1x4x256xf32>
    %161 = vector.shape_cast %160 : vector<1x1x4x256xf32> to vector<4x256xf32>
    %162 = arith.mulf %161, %159 : vector<4x256xf32>
    %163 = arith.addf %152, %162 : vector<4x256xf32>
    %cst_155 = arith.constant 0.000000e+00 : f32
    %164 = vector.broadcast %cst_155 : f32 to vector<4x256xf32>
    %165 = arith.cmpf oge, %163, %164 : vector<4x256xf32>
    %cst_156 = arith.constant 2.000000e-01 : f32
    %166 = vector.broadcast %cst_156 : f32 to vector<4x256xf32>
    %167 = arith.mulf %166, %163 : vector<4x256xf32>
    %168 = arith.select %165, %163, %167 : vector<4x256xi1>, vector<4x256xf32>
    %c0_157 = arith.constant 0 : index
    %c0_158 = arith.constant 0 : index
    %c0_159 = arith.constant 0 : index
    %169 = vector.load %arg7[%c0_157, %c0_158, %c0_159] : memref<1x4x256xf32, #tpu.memory_space<vmem>>, vector<1x4x256xf32>
    %170 = vector.shape_cast %169 : vector<1x4x256xf32> to vector<4x256xf32>
    %171 = vector.shape_cast %168 : vector<4x256xf32> to vector<1x4x256xf32>
    tpu.vector_store %arg7[%c0_157, %c0_158, %c0_159], %171 {strides = array<i32>} : memref<1x4x256xf32, #tpu.memory_space<vmem>>, vector<1x4x256xf32>,
    return
  }
  func.func @transform_0(%arg0: i32, %arg1: i32) -> (i32, i32, i32, i32) {
    %c0_i32 = arith.constant 0 : i32
    %c0_i32_0 = arith.constant 0 : i32
    %c0_i32_1 = arith.constant 0 : i32
    return %arg0, %c0_i32, %c0_i32_0, %arg1 : i32, i32, i32, i32
  }
  func.func @transform_1(%arg0: i32, %arg1: i32) -> (i32, i32, i32) {
    %c0_i32 = arith.constant 0 : i32
    %c0_i32_0 = arith.constant 0 : i32
    %c0_i32_1 = arith.constant 0 : i32
    %c0_i32_2 = arith.constant 0 : i32
    return %c0_i32, %c0_i32_0, %c0_i32_1 : i32, i32, i32
  }
  func.func @transform_2(%arg0: i32, %arg1: i32) -> (i32, i32, i32) {
    %c0_i32 = arith.constant 0 : i32
    %c0_i32_0 = arith.constant 0 : i32
    %c0_i32_1 = arith.constant 0 : i32
    return %arg0, %c0_i32, %c0_i32_0 : i32, i32, i32
  }
  func.func @transform_3(%arg0: i32, %arg1: i32) -> (i32, i32, i32) {
    %c0_i32 = arith.constant 0 : i32
    %c0_i32_0 = arith.constant 0 : i32
    %c0_i32_1 = arith.constant 0 : i32
    %c0_i32_2 = arith.constant 0 : i32
    return %c0_i32, %c0_i32_0, %c0_i32_1 : i32, i32, i32
  }
  func.func @transform_4(%arg0: i32, %arg1: i32) -> (i32, i32, i32) {
    %c0_i32 = arith.constant 0 : i32
    %c0_i32_0 = arith.constant 0 : i32
    %c0_i32_1 = arith.constant 0 : i32
    %c0_i32_2 = arith.constant 0 : i32
    return %c0_i32, %c0_i32_0, %c0_i32_1 : i32, i32, i32
  }
  func.func @transform_5(%arg0: i32, %arg1: i32) -> (i32, i32, i32) {
    %c0_i32 = arith.constant 0 : i32
    %c0_i32_0 = arith.constant 0 : i32
    return %arg0, %c0_i32, %arg1 : i32, i32, i32
  }
}

module attributes {stable_mosaic.version = 11 : i64} {
  func.func @_conv_res_kernel(%arg0: i32, %arg1: i32, %arg2: memref<1x36x256xf32, #tpu.memory_space<vmem>>, %arg3: memref<4x36xf32, #tpu.memory_space<vmem>>, %arg4: memref<4x1xf32, #tpu.memory_space<vmem>>, %arg5: memref<1x4x256xf32, #tpu.memory_space<vmem>>, %arg6: memref<1x4x256xf32, #tpu.memory_space<vmem>>) attributes {dimension_semantics = [#tpu.dimension_semantics<parallel>, #tpu.dimension_semantics<parallel>], iteration_bounds = array<i64: 2, 1>, scalar_prefetch = 0 : i64, scratch_operands = 0 : i64, tpu.core_type = #tpu.core_type<tc>, window_params = [{transform_indices = @transform_0, window_bounds = array<i64: 1, 36, 256>}, {pipeline_mode = #tpu.pipeline_mode<synchronous>, transform_indices = @transform_1, window_bounds = array<i64: 4, 36>}, {pipeline_mode = #tpu.pipeline_mode<synchronous>, transform_indices = @transform_2, window_bounds = array<i64: 4, 1>}, {transform_indices = @transform_3, window_bounds = array<i64: 1, 4, 256>}, {transform_indices = @transform_4, window_bounds = array<i64: 1, 4, 256>}]} {
    %c0 = arith.constant 0 : index
    %c0_0 = arith.constant 0 : index
    %0 = vector.load %arg3[%c0, %c0_0] : memref<4x36xf32, #tpu.memory_space<vmem>>, vector<4x36xf32>
    %c0_1 = arith.constant 0 : index
    %c0_2 = arith.constant 0 : index
    %c0_3 = arith.constant 0 : index
    %1 = vector.load %arg2[%c0_1, %c0_2, %c0_3] : memref<1x36x256xf32, #tpu.memory_space<vmem>>, vector<1x36x256xf32>
    %2 = vector.shape_cast %1 : vector<1x36x256xf32> to vector<36x256xf32>
    %cst = arith.constant dense<0.000000e+00> : vector<4x256xf32>
    %3 = tpu.matmul %0, %2, %cst {dimension_numbers = #tpu.dot_dimension_numbers<[1], [0], [0], [1], [0, 0, 1, 1], [], []>} : vector<4x36xf32>, vector<36x256xf32>, vector<4x256xf32> -> vector<4x256xf32>
    %c0_4 = arith.constant 0 : index
    %c0_5 = arith.constant 0 : index
    %4 = vector.load %arg4[%c0_4, %c0_5] : memref<4x1xf32, #tpu.memory_space<vmem>>, vector<4x1xf32>
    %5 = vector.broadcast %4 : vector<4x1xf32> to vector<4x256xf32>
    %6 = arith.addf %3, %5 : vector<4x256xf32>
    %c0_6 = arith.constant 0 : index
    %c0_7 = arith.constant 0 : index
    %c0_8 = arith.constant 0 : index
    %7 = vector.load %arg5[%c0_6, %c0_7, %c0_8] : memref<1x4x256xf32, #tpu.memory_space<vmem>>, vector<1x4x256xf32>
    %8 = vector.shape_cast %7 : vector<1x4x256xf32> to vector<4x256xf32>
    %9 = arith.addf %6, %8 : vector<4x256xf32>
    %c0_9 = arith.constant 0 : index
    %c0_10 = arith.constant 0 : index
    %c0_11 = arith.constant 0 : index
    %10 = vector.load %arg6[%c0_9, %c0_10, %c0_11] : memref<1x4x256xf32, #tpu.memory_space<vmem>>, vector<1x4x256xf32>
    %11 = vector.shape_cast %10 : vector<1x4x256xf32> to vector<4x256xf32>
    %12 = vector.shape_cast %9 : vector<4x256xf32> to vector<1x4x256xf32>
    tpu.vector_store %arg6[%c0_9, %c0_10, %c0_11], %12 {strides = array<i32>} : memref<1x4x256xf32, #tpu.memory_space<vmem>>, vector<1x4x256xf32>,
    return
  }
  func.func @transform_0(%arg0: i32, %arg1: i32) -> (i32, i32, i32) {
    %c0_i32 = arith.constant 0 : i32
    %c0_i32_0 = arith.constant 0 : i32
    return %arg0, %c0_i32, %arg1 : i32, i32, i32
  }
  func.func @transform_1(%arg0: i32, %arg1: i32) -> (i32, i32) {
    %c0_i32 = arith.constant 0 : i32
    %c0_i32_0 = arith.constant 0 : i32
    %c0_i32_1 = arith.constant 0 : i32
    return %c0_i32, %c0_i32_0 : i32, i32
  }
  func.func @transform_2(%arg0: i32, %arg1: i32) -> (i32, i32) {
    %c0_i32 = arith.constant 0 : i32
    %c0_i32_0 = arith.constant 0 : i32
    %c0_i32_1 = arith.constant 0 : i32
    return %c0_i32, %c0_i32_0 : i32, i32
  }
  func.func @transform_3(%arg0: i32, %arg1: i32) -> (i32, i32, i32) {
    %c0_i32 = arith.constant 0 : i32
    %c0_i32_0 = arith.constant 0 : i32
    return %arg0, %c0_i32, %arg1 : i32, i32, i32
  }
  func.func @transform_4(%arg0: i32, %arg1: i32) -> (i32, i32, i32) {
    %c0_i32 = arith.constant 0 : i32
    %c0_i32_0 = arith.constant 0 : i32
    return %arg0, %c0_i32, %arg1 : i32, i32, i32
  }
}

</mosaic_0001>

<llo_original>
// kernel: squeeze.9
$region0: #{squeeze.9}
  %s0 = inlined_call_operand.vmem [shape: f32[36,4], index: 0, kind: input, shape index: {}]
  %s1 = inlined_call_operand.vmem [shape: f32[4,9,4], index: 1, kind: output, shape index: {}]
  $region1: #{squeeze.9} parent=0
    #allocation0 [shape = 'u8[16384]{0}', space=vmem, size = 0x4000, scoped, tag = 'scoped mem for output reshape']
    #allocation1 [shape = 'u8[4096]{0}', space=vmem, size = 0x1000, scoped, tag = 'scoped mem for input reshape']
    %s3 = ssub.s32 16, 1
    %v4 = vld [vmem:[%s0] sm:%s3]
    %5 = vst [vmem:[#allocation1] sm:%s3] %v4
    %v6 = vld [vmem:[#allocation1] sm:$0xf]
    %vm7 = vcmask 72704
    %8 = vst.msk [vmem:[#allocation0] ss:$8 sm:$0xf] %vm7, %v6
    %v9 = vld [vmem:[#allocation1] sm:$0xf]
    %10 = vrot.lane.b32.xlu0 %v9, 119
    %v11 = vpop.permute.xlu0 %10
    %vm12 = vcmask 72704
    %s13 = scalar_lea.vmem [#allocation0], 1
    %14 = vst.msk [vmem:[%s13] ss:$8 sm:$0xf] %vm12, %v11
    %v15 = vld [vmem:[#allocation1] sm:$0xf]
    %16 = vrot.lane.b32.xlu0 %v15, 110
    %v17 = vpop.permute.xlu0 %16
    %vm18 = vcmask 72704
    %s19 = scalar_lea.vmem [#allocation0], 2
    %20 = vst.msk [vmem:[%s19] ss:$8 sm:$0xf] %vm18, %v17
    %v21 = vld [vmem:[#allocation1] sm:$0xf]
    %22 = vrot.lane.b32.xlu0 %v21, 101
    %v23 = vpop.permute.xlu0 %22
    %vm24 = vcmask 72704
    %s25 = scalar_lea.vmem [#allocation0], 3
    %26 = vst.msk [vmem:[%s25] ss:$8 sm:$0xf] %vm24, %v23
    %s28 = ssub.s32 16, 1
    %v29 = vld [vmem:[#allocation0] sm:%s28]
    %s31 = ssub.s32 16, 1
    %32 = vst [vmem:[%s1] sm:%s31] %v29
    %s33 = scalar_lea.vmem [#allocation0], 8
    %v34 = vld [vmem:[%s33] sm:%s28]
    %s36 = ssub.s32 16, 1
    %s37 = scalar_lea.vmem %s1, 4
    %38 = vst [vmem:[%s37] sm:%s36] %v34
    %s39 = scalar_lea.vmem [#allocation0], 16
    %v40 = vld [vmem:[%s39] sm:%s28]
    %s42 = ssub.s32 16, 1
    %s43 = scalar_lea.vmem %s1, 8
    %44 = vst [vmem:[%s43] sm:%s42] %v40
    %s45 = scalar_lea.vmem [#allocation0], 24
    %v46 = vld [vmem:[%s45] sm:%s28]
    %s48 = ssub.s32 16, 1
    %s49 = scalar_lea.vmem %s1, 12
    %50 = vst [vmem:[%s49] sm:%s48] %v46

// kernel: dcb_forward.3
$region0: #{dcb_forward.3}
  #allocation0 [shape = 'u32[]', space=smem, size = 0x4, offset = 0x4, fixed_abs, tag = 'smem constant byte address 0x4 - core index']
  #allocation1 [shape = 'u32[72,128]{1,0:T(1,128)}', space=vmem, size = 0x9000, scoped, tag = 'internal scratch']
  %s0 = inlined_call_operand.vmem [shape: f32[2,36,256], index: 0, kind: input, shape index: {}]
  %s1 = inlined_call_operand.vmem [shape: f32[4,36], index: 1, kind: input, shape index: {}]
  %s2 = inlined_call_operand.vmem [shape: f32[4,1], index: 2, kind: input, shape index: {}]
  %s3 = inlined_call_operand.vmem [shape: f32[2,4,256], index: 3, kind: output, shape index: {}]
  %s4 = sld [smem:[#allocation0]]
  $region45: #{dcb_forward.3} parent=0
    _
  %s6 = ssub.s32 1, %s4
  %s7 = scalar_select 0, %s6, %s4
  loop: start=0, step=1, limit=4
  $region2: #{dcb_forward.3} parent=0 // loop_pre_header
    _
  $region3: #{dcb_forward.3} parent=0 // loop_header
    %s9 = sphi 0, %s13
    %p10 = scmp.ge.s32.totalorder %s9, 4
    %s16 = sphi 0, %s28
    %s17 = sphi 0, %s24
    %s18 = sphi 0, %s16
    %s19 = sphi 0, %s17
    %s20 = sphi 0, %s18
    %s21 = sphi 0, %s19
    %s33 = sphi 0, %s35
    %s36 = sphi 0, %s33
    %s37 = sphi 0, %s36
    %s53 = sphi 0, %s37
    %s57 = sphi 0, %s57
    %s59 = sphi 0, %s57
    %s60 = sphi 0, %s59
    %s74 = sphi 0, %s60
    %s78 = sphi 0, %s78
    %s80 = sphi 0, %s78
    %s81 = sphi 0, %s80
    %s95 = sphi 0, %s81
    %s103 = sphi 0, %s105
    %s106 = sphi 0, %s103
    %s107 = sphi 0, %s106
    %s123 = sphi 0, %s107
  $region4: #{dcb_forward.3} parent=0 // loop_header_branch
    %12 = sbr.rel (%p10) target = $region8
  $region5: #{dcb_forward.3} parent=0 // loop_body
    %s14 = ssub.s32 %s9, 1
    %s15 = ssub.s32 %s9, 2
    %s22 = sadd.s32 1, %s17
    %p23 = scmp.ge.s32.totalorder %s22, 1
    %s24 = scalar_select %p23, 0, %s22
    %s25 = sadd.s32 1, %s16
    %s26 = scalar_select %p23, %s25, %s16
    %p27 = scmp.ge.s32.totalorder %s26, 2
    %s28 = scalar_select %p27, 0, %s26
    %s29 = ssub.s32 %s16, %s28
    %s30 = ssub.s32 %s17, %s24
    %s31 = sor.u32 %s29, %s30
    %p32 = scmp.eq.s32.totalorder %s31, 0
    %s34 = sadd.s32 %s33, 1
    %s35 = scalar_select %p32, %s33, %s34
    %p38 = pneg %p32
    %p39 = scmp.eq.s32.totalorder %s9, 1
    %p40 = por %p38, %p39
    %p41 = scmp.ne.s32.totalorder %s33, %s36
    %p42 = scmp.eq.s32.totalorder %s9, 0
    %p43 = por %p41, %p42
    %p44 = scmp.ne.s32.totalorder %s33, %s36
    %p45 = scmp.eq.s32.totalorder %s14, 1
    %p46 = por %p44, %p45
    %p47 = scmp.ne.s32.totalorder %s36, %s37
    %p48 = scmp.eq.s32.totalorder %s14, 0
    %p49 = por %p47, %p48
    %p50 = scmp.ne.s32.totalorder %s36, %s37
    %p51 = scmp.eq.s32.totalorder %s15, 1
    %p52 = por %p50, %p51
    %p54 = scmp.ne.s32.totalorder %s37, %s53
    %p55 = scmp.eq.s32.totalorder %s15, 0
    %p56 = por %p54, %p55
    %s58 = sadd.s32 %s57, 1
    %p61 = scmp.eq.s32.totalorder %s9, 1
    %p62 = scmp.ne.s32.totalorder %s57, %s59
    %p63 = scmp.eq.s32.totalorder %s9, 0
    %p64 = por %p62, %p63
    %p65 = scmp.ne.s32.totalorder %s57, %s59
    %p66 = scmp.eq.s32.totalorder %s14, 1
    %p67 = por %p65, %p66
    %p68 = scmp.ne.s32.totalorder %s59, %s60
    %p69 = scmp.eq.s32.totalorder %s14, 0
    %p70 = por %p68, %p69
    %p71 = scmp.ne.s32.totalorder %s59, %s60
    %p72 = scmp.eq.s32.totalorder %s15, 1
    %p73 = por %p71, %p72
    %p75 = scmp.ne.s32.totalorder %s60, %s74
    %p76 = scmp.eq.s32.totalorder %s15, 0
    %p77 = por %p75, %p76
    %s79 = sadd.s32 %s78, 1
    %p82 = scmp.eq.s32.totalorder %s9, 1
    %p83 = scmp.ne.s32.totalorder %s78, %s80
    %p84 = scmp.eq.s32.totalorder %s9, 0
    %p85 = por %p83, %p84
    %p86 = scmp.ne.s32.totalorder %s78, %s80
    %p87 = scmp.eq.s32.totalorder %s14, 1
    %p88 = por %p86, %p87
    %p89 = scmp.ne.s32.totalorder %s80, %s81
    %p90 = scmp.eq.s32.totalorder %s14, 0
    %p91 = por %p89, %p90
    %p92 = scmp.ne.s32.totalorder %s80, %s81
    %p93 = scmp.eq.s32.totalorder %s15, 1
    %p94 = por %p92, %p93
    %p96 = scmp.ne.s32.totalorder %s81, %s95
    %p97 = scmp.eq.s32.totalorder %s15, 0
    %p98 = por %p96, %p97
    %s99 = ssub.s32 %s16, %s28
    %s100 = ssub.s32 %s17, %s24
    %s101 = sor.u32 %s99, %s100
    %p102 = scmp.eq.s32.totalorder %s101, 0
    %s104 = sadd.s32 %s103, 1
    %s105 = scalar_select %p102, %s103, %s104
    %p108 = pneg %p102
    %p109 = scmp.eq.s32.totalorder %s9, 1
    %p110 = por %p108, %p109
    %p111 = scmp.ne.s32.totalorder %s103, %s106
    %p112 = scmp.eq.s32.totalorder %s9, 0
    %p113 = por %p111, %p112
    %p114 = scmp.ne.s32.totalorder %s103, %s106
    %p115 = scmp.eq.s32.totalorder %s14, 1
    %p116 = por %p114, %p115
    %p117 = scmp.ne.s32.totalorder %s106, %s107
    %p118 = scmp.eq.s32.totalorder %s14, 0
    %p119 = por %p117, %p118
    %p120 = scmp.ne.s32.totalorder %s106, %s107
    %p121 = scmp.eq.s32.totalorder %s15, 1
    %p122 = por %p120, %p121
    %p124 = scmp.ne.s32.totalorder %s107, %s123
    %p125 = scmp.eq.s32.totalorder %s15, 0
    %p126 = por %p124, %p125
    %p127 = scmp.le.s32.totalorder 1, %s9
    %p128 = scmp.lt.s32.totalorder %s9, 3
    %p129 = pnand %p127, %p128
    %p130 = pneg %p129
    // Predicated region
    $region9: #{dcb_forward.3} parent=5 // pred_check
      _
    $region10: #{dcb_forward.3} parent=5 // pred_check_branch
      %132 = sbr.rel (%p129) target = $region12
    $region11: #{dcb_forward.3} parent=5 // pred_region
      %s133 = ssub.s32 %s9, 1
      // Predicated region
      $region13: #{dcb_forward.3} parent=11 // pred_check
        %p134 = pneg %p70
      $region14: #{dcb_forward.3} parent=11 // pred_check_branch
        %136 = sbr.rel (%p134) target = $region16
      $region15: #{dcb_forward.3} parent=11 // pred_region
        _
      $region16: #{dcb_forward.3} parent=11 // pred_fallthru
        _
      // Predicated region
      $region17: #{dcb_forward.3} parent=11 // pred_check
        %p137 = pneg %p91
      $region18: #{dcb_forward.3} parent=11 // pred_check_branch
        %139 = sbr.rel (%p137) target = $region20
      $region19: #{dcb_forward.3} parent=11 // pred_region
        _
      $region20: #{dcb_forward.3} parent=11 // pred_fallthru
        _
    $region12: #{dcb_forward.3} parent=5 // pred_fallthru
      _
    %p140 = scmp.lt.s32.totalorder %s9, 2
    // Predicated region
    $region21: #{dcb_forward.3} parent=5 // pred_check
      %p141 = pneg %p140
    $region22: #{dcb_forward.3} parent=5 // pred_check_branch
      %143 = sbr.rel (%p141) target = $region24
    $region23: #{dcb_forward.3} parent=5 // pred_region
      // Predicated region
      $region25: #{dcb_forward.3} parent=23 // pred_check
        %p144 = pneg %p43
      $region26: #{dcb_forward.3} parent=23 // pred_check_branch
        %146 = sbr.rel (%p144) target = $region28
      $region27: #{dcb_forward.3} parent=23 // pred_region
        %s147 = smul.u32 2, %s17
        %p148 = scmp.lt.s32.totalorder %s16, 1
        %s149 = scalar_select %p148, %s16, 1
        %p150 = scmp.lt.s32.totalorder %s147, 1
        %s151 = scalar_select %p150, %s147, 1
        %s152 = smul.addr %s149, 10
        %s153 = sadd.s32 %s151, %s152
        %s154 = smul.addr %s153, 8
        %s155 = scalar_lea.vmem %s0, %s154
        %s156 = smul.u32 2, %s17
      $region28: #{dcb_forward.3} parent=23 // pred_fallthru
        _
    $region24: #{dcb_forward.3} parent=5 // pred_fallthru
      _
    %p157 = scmp.le.s32.totalorder 1, %s9
    %p158 = scmp.lt.s32.totalorder %s9, 3
    %p159 = pnand %p157, %p158
    %p160 = pneg %p159
    // Predicated region
    $region29: #{dcb_forward.3} parent=5 // pred_check
      _
    $region30: #{dcb_forward.3} parent=5 // pred_check_branch
      %162 = sbr.rel (%p159) target = $region32
    $region31: #{dcb_forward.3} parent=5 // pred_region
      %s163 = ssub.s32 %s9, 1
      %s164 = smul.u32 2, %s19
      %p165 = scmp.lt.s32.totalorder %s18, 1
      %s166 = scalar_select %p165, %s18, 1
      %p167 = scmp.lt.s32.totalorder %s164, 1
      %s168 = scalar_select %p167, %s164, 1
      %s169 = smul.addr %s166, 10
      %s170 = sadd.s32 %s168, %s169
      %s171 = smul.addr %s170, 8
      %s172 = scalar_lea.vmem %s0, %s171
      %p173 = pneg %p49
      %p174 = pneg %p46
      %p175 = pneg %p70
      %p176 = pneg %p67
      %p177 = pneg %p91
      %p178 = pneg %p88
      %p179 = pneg %p119
      %p180 = pneg %p116
      %s181 = smul.u32 2, %s19
      %p182 = scmp.lt.s32.totalorder %s18, 1
      %s183 = scalar_select %p182, %s18, 1
      %p184 = scmp.lt.s32.totalorder %s181, 1
      %s185 = scalar_select %p184, %s181, 1
      %s186 = smul.addr %s183, 2
      %s187 = sadd.s32 %s185, %s186
      %s188 = smul.addr %s187, 4
      %s189 = scalar_lea.vmem %s3, %s188
      %s190 = smul.u32 2, %s19
      %p191 = scmp.lt.s32.totalorder %s18, 1
      %s192 = scalar_select %p191, %s18, 1
      %p193 = scmp.lt.s32.totalorder %s190, 1
      %s194 = scalar_select %p193, %s190, 1
      %s195 = smul.addr %s192, 10
      %s196 = sadd.s32 %s194, %s195
      %s197 = smul.addr %s196, 8
      %s198 = scalar_lea.vmem %s0, %s197
      %s199 = smul.u32 2, %s19
      %s200 = smul.u32 2, %s19
      %p201 = scmp.lt.s32.totalorder %s18, 1
      %s202 = scalar_select %p201, %s18, 1
      %p203 = scmp.lt.s32.totalorder %s200, 1
      %s204 = scalar_select %p203, %s200, 1
      %s205 = smul.addr %s202, 2
      %s206 = sadd.s32 %s204, %s205
      %s207 = smul.addr %s206, 4
      %s208 = scalar_lea.vmem %s3, %s207
      %s209 = smul.u32 2, %s19
      %v210 = vld [vmem:[%s1] sm:$0xf]
      %v211 = vld [vmem:[%s198] sm:$0xff]
      %v212 = vld [vmem:[%s198 + $0x8] sm:$0xff]
      %v213 = vld [vmem:[%s198 + $0x10] sm:$0xff]
      %v214 = vld [vmem:[%s198 + $0x18] sm:$0xff]
      %v215 = vld [vmem:[%s198 + $0x20] sm:$0xff]
      %v216 = vld [vmem:[%s198 + $0x28] sm:$0xff]
      %v217 = vld [vmem:[%s198 + $0x30] sm:$0xff]
      %v218 = vld [vmem:[%s198 + $0x38] sm:$0xff]
      %v219 = vld [vmem:[%s198 + $0x40] sm:$0xf]
      %v220 = vld [vmem:[%s198 + $0x48] sm:$0xf]
      %v221 = vld [vmem:[%s2] sm:$0xf]
      %223 = vset.pattern.permute.xlu0 0
      %224 = vperm.xlu0 %223, %v221
      %v225 = vpop.permute.xlu0 %224
      %vm227 = vcmask 293888
      %v229 = vsel %vm227, %v210, 0
      %vm231 = vcmask 1043456
      %v233 = vsel %vm231, %v219, 0
      %v236 = vsel %vm231, %v220, 0
      %238 = vmatpush.msra.mxu0 0.0
      %239 = vmatpush.msra.mxu0 0.0
      %240 = vmatpush.msra.mxu0 0.0
      %241 = vmatpush.msra.mxu0 0.0
      %242 = vmatpush.msra.mxu0 0.0
      %243 = vmatpush.msra.mxu0 0.0
      %244 = vmatpush.msra.mxu0 0.0
      %245 = vmatpush.msra.mxu0 0.0
      %246 = vmatpush.msra.mxu0 0.0
      %247 = vmatpush.msra.mxu0 0.0
      %248 = vmatpush.msra.mxu0 0.0
      %249 = vmatpush.msra.mxu0 %v233
      %250 = vmatpush.msra.mxu0 %v217
      %251 = vmatpush.msra.mxu0 %v215
      %252 = vmatpush.msra.mxu0 %v213
      %253 = vmatpush.msra.mxu0 %v211
      %254 = vmatmul.f32.gmra.mxu0 %v229
      %v255 = vpop.f32.mrf.mxu0
      %v256 = vadd.f32 %v225, %v255
      %257 = vdwg.mxu0
      %258 = vmatpush.msra.mxu0 0.0
      %259 = vmatpush.msra.mxu0 0.0
      %260 = vmatpush.msra.mxu0 0.0
      %261 = vmatpush.msra.mxu0 0.0
      %262 = vmatpush.msra.mxu0 0.0
      %263 = vmatpush.msra.mxu0 0.0
      %264 = vmatpush.msra.mxu0 0.0
      %265 = vmatpush.msra.mxu0 0.0
      %266 = vmatpush.msra.mxu0 0.0
      %267 = vmatpush.msra.mxu0 0.0
      %268 = vmatpush.msra.mxu0 0.0
      %269 = vmatpush.msra.mxu0 %v236
      %270 = vmatpush.msra.mxu0 %v218
      %271 = vmatpush.msra.mxu0 %v216
      %272 = vmatpush.msra.mxu0 %v214
      %273 = vmatpush.msra.mxu0 %v212
      %274 = vmatmul.f32.gmra.mxu0 %v229
      %v275 = vpop.f32.mrf.mxu0
      %v276 = vadd.f32 %v225, %v275
      %277 = vdwg.mxu0
      %v280 = vrot.slane %v276, 4
      %v281 = vsel %vm231, %v256, %v280
      %283 = vst [vmem:[%s208] sm:$0xff] %v281
      %s284 = smul.u32 2, %s19
      %p285 = scmp.lt.s32.totalorder %s18, 1
      %s286 = scalar_select %p285, %s18, 1
      %p287 = scmp.lt.s32.totalorder %s284, 1
      %s288 = scalar_select %p287, %s284, 1
      %s289 = smul.addr %s286, 2
      %s290 = sadd.s32 %s288, %s289
      %s291 = smul.addr %s290, 4
      %s292 = scalar_lea.vmem %s3, %s291
      // Predicated region
      $region33: #{dcb_forward.3} parent=31 // pred_check
        %p293 = pneg %p116
      $region34: #{dcb_forward.3} parent=31 // pred_check_branch
        %295 = sbr.rel (%p293) target = $region36
      $region35: #{dcb_forward.3} parent=31 // pred_region
        %s296 = smul.u32 2, %s19
      $region36: #{dcb_forward.3} parent=31 // pred_fallthru
        _
    $region32: #{dcb_forward.3} parent=5 // pred_fallthru
      _
    %p297 = scmp.le.s32.totalorder 2, %s9
    // Predicated region
    $region37: #{dcb_forward.3} parent=5 // pred_check
      %p298 = pneg %p297
    $region38: #{dcb_forward.3} parent=5 // pred_check_branch
      %300 = sbr.rel (%p298) target = $region40
    $region39: #{dcb_forward.3} parent=5 // pred_region
      %s301 = ssub.s32 %s9, 2
      // Predicated region
      $region41: #{dcb_forward.3} parent=39 // pred_check
        %p302 = pneg %p122
      $region42: #{dcb_forward.3} parent=39 // pred_check_branch
        %304 = sbr.rel (%p302) target = $region44
      $region43: #{dcb_forward.3} parent=39 // pred_region
        %s305 = smul.u32 2, %s21
        %p306 = scmp.lt.s32.totalorder %s20, 1
        %s307 = scalar_select %p306, %s20, 1
        %p308 = scmp.lt.s32.totalorder %s305, 1
        %s309 = scalar_select %p308, %s305, 1
        %s310 = smul.addr %s307, 2
        %s311 = sadd.s32 %s309, %s310
        %s312 = smul.addr %s311, 4
        %s313 = scalar_lea.vmem %s3, %s312
      $region44: #{dcb_forward.3} parent=39 // pred_fallthru
        _
    $region40: #{dcb_forward.3} parent=5 // pred_fallthru
      _
  $region6: #{dcb_forward.3} parent=0 // loop_footer
    %s13 = sadd.s32 1, %s9
  $region7: #{dcb_forward.3} parent=0 // loop_footer_branch
    %8 = sbr.rel target = $region3
  $region8: #{dcb_forward.3} parent=0 // loop_exit
    _

// kernel: dcb_forward.5
$region0: #{dcb_forward.5}
  #allocation0 [shape = 'u32[]', space=smem, size = 0x4, offset = 0x4, fixed_abs, tag = 'smem constant byte address 0x4 - core index']
  #allocation1 [shape = 'u32[72,128]{1,0:T(1,128)}', space=vmem, size = 0x9000, scoped, tag = 'internal scratch']
  %s0 = inlined_call_operand.vmem [shape: f32[2,36,256], index: 0, kind: input, shape index: {}]
  %s1 = inlined_call_operand.vmem [shape: f32[4,36], index: 1, kind: input, shape index: {}]
  %s2 = inlined_call_operand.vmem [shape: f32[4,1], index: 2, kind: input, shape index: {}]
  %s3 = inlined_call_operand.vmem [shape: f32[2,4,256], index: 3, kind: input, shape index: {}]
  %s4 = inlined_call_operand.vmem [shape: f32[2,4,256], index: 4, kind: output, shape index: {}]
  %s5 = sld [smem:[#allocation0]]
  $region49: #{dcb_forward.5} parent=0
    _
  %s7 = ssub.s32 1, %s5
  %s8 = scalar_select 0, %s7, %s5
  loop: start=0, step=1, limit=4
  $region2: #{dcb_forward.5} parent=0 // loop_pre_header
    _
  $region3: #{dcb_forward.5} parent=0 // loop_header
    %s10 = sphi 0, %s14
    %p11 = scmp.ge.s32.totalorder %s10, 4
    %s17 = sphi 0, %s29
    %s18 = sphi 0, %s25
    %s19 = sphi 0, %s17
    %s20 = sphi 0, %s18
    %s21 = sphi 0, %s19
    %s22 = sphi 0, %s20
    %s34 = sphi 0, %s36
    %s37 = sphi 0, %s34
    %s38 = sphi 0, %s37
    %s54 = sphi 0, %s38
    %s58 = sphi 0, %s58
    %s60 = sphi 0, %s58
    %s61 = sphi 0, %s60
    %s75 = sphi 0, %s61
    %s79 = sphi 0, %s79
    %s81 = sphi 0, %s79
    %s82 = sphi 0, %s81
    %s96 = sphi 0, %s82
    %s104 = sphi 0, %s106
    %s107 = sphi 0, %s104
    %s108 = sphi 0, %s107
    %s124 = sphi 0, %s108
    %s132 = sphi 0, %s134
    %s135 = sphi 0, %s132
    %s136 = sphi 0, %s135
    %s152 = sphi 0, %s136
  $region4: #{dcb_forward.5} parent=0 // loop_header_branch
    %13 = sbr.rel (%p11) target = $region8
  $region5: #{dcb_forward.5} parent=0 // loop_body
    %s15 = ssub.s32 %s10, 1
    %s16 = ssub.s32 %s10, 2
    %s23 = sadd.s32 1, %s18
    %p24 = scmp.ge.s32.totalorder %s23, 1
    %s25 = scalar_select %p24, 0, %s23
    %s26 = sadd.s32 1, %s17
    %s27 = scalar_select %p24, %s26, %s17
    %p28 = scmp.ge.s32.totalorder %s27, 2
    %s29 = scalar_select %p28, 0, %s27
    %s30 = ssub.s32 %s17, %s29
    %s31 = ssub.s32 %s18, %s25
    %s32 = sor.u32 %s30, %s31
    %p33 = scmp.eq.s32.totalorder %s32, 0
    %s35 = sadd.s32 %s34, 1
    %s36 = scalar_select %p33, %s34, %s35
    %p39 = pneg %p33
    %p40 = scmp.eq.s32.totalorder %s10, 1
    %p41 = por %p39, %p40
    %p42 = scmp.ne.s32.totalorder %s34, %s37
    %p43 = scmp.eq.s32.totalorder %s10, 0
    %p44 = por %p42, %p43
    %p45 = scmp.ne.s32.totalorder %s34, %s37
    %p46 = scmp.eq.s32.totalorder %s15, 1
    %p47 = por %p45, %p46
    %p48 = scmp.ne.s32.totalorder %s37, %s38
    %p49 = scmp.eq.s32.totalorder %s15, 0
    %p50 = por %p48, %p49
    %p51 = scmp.ne.s32.totalorder %s37, %s38
    %p52 = scmp.eq.s32.totalorder %s16, 1
    %p53 = por %p51, %p52
    %p55 = scmp.ne.s32.totalorder %s38, %s54
    %p56 = scmp.eq.s32.totalorder %s16, 0
    %p57 = por %p55, %p56
    %s59 = sadd.s32 %s58, 1
    %p62 = scmp.eq.s32.totalorder %s10, 1
    %p63 = scmp.ne.s32.totalorder %s58, %s60
    %p64 = scmp.eq.s32.totalorder %s10, 0
    %p65 = por %p63, %p64
    %p66 = scmp.ne.s32.totalorder %s58, %s60
    %p67 = scmp.eq.s32.totalorder %s15, 1
    %p68 = por %p66, %p67
    %p69 = scmp.ne.s32.totalorder %s60, %s61
    %p70 = scmp.eq.s32.totalorder %s15, 0
    %p71 = por %p69, %p70
    %p72 = scmp.ne.s32.totalorder %s60, %s61
    %p73 = scmp.eq.s32.totalorder %s16, 1
    %p74 = por %p72, %p73
    %p76 = scmp.ne.s32.totalorder %s61, %s75
    %p77 = scmp.eq.s32.totalorder %s16, 0
    %p78 = por %p76, %p77
    %s80 = sadd.s32 %s79, 1
    %p83 = scmp.eq.s32.totalorder %s10, 1
    %p84 = scmp.ne.s32.totalorder %s79, %s81
    %p85 = scmp.eq.s32.totalorder %s10, 0
    %p86 = por %p84, %p85
    %p87 = scmp.ne.s32.totalorder %s79, %s81
    %p88 = scmp.eq.s32.totalorder %s15, 1
    %p89 = por %p87, %p88
    %p90 = scmp.ne.s32.totalorder %s81, %s82
    %p91 = scmp.eq.s32.totalorder %s15, 0
    %p92 = por %p90, %p91
    %p93 = scmp.ne.s32.totalorder %s81, %s82
    %p94 = scmp.eq.s32.totalorder %s16, 1
    %p95 = por %p93, %p94
    %p97 = scmp.ne.s32.totalorder %s82, %s96
    %p98 = scmp.eq.s32.totalorder %s16, 0
    %p99 = por %p97, %p98
    %s100 = ssub.s32 %s17, %s29
    %s101 = ssub.s32 %s18, %s25
    %s102 = sor.u32 %s100, %s101
    %p103 = scmp.eq.s32.totalorder %s102, 0
    %s105 = sadd.s32 %s104, 1
    %s106 = scalar_select %p103, %s104, %s105
    %p109 = pneg %p103
    %p110 = scmp.eq.s32.totalorder %s10, 1
    %p111 = por %p109, %p110
    %p112 = scmp.ne.s32.totalorder %s104, %s107
    %p113 = scmp.eq.s32.totalorder %s10, 0
    %p114 = por %p112, %p113
    %p115 = scmp.ne.s32.totalorder %s104, %s107
    %p116 = scmp.eq.s32.totalorder %s15, 1
    %p117 = por %p115, %p116
    %p118 = scmp.ne.s32.totalorder %s107, %s108
    %p119 = scmp.eq.s32.totalorder %s15, 0
    %p120 = por %p118, %p119
    %p121 = scmp.ne.s32.totalorder %s107, %s108
    %p122 = scmp.eq.s32.totalorder %s16, 1
    %p123 = por %p121, %p122
    %p125 = scmp.ne.s32.totalorder %s108, %s124
    %p126 = scmp.eq.s32.totalorder %s16, 0
    %p127 = por %p125, %p126
    %s128 = ssub.s32 %s17, %s29
    %s129 = ssub.s32 %s18, %s25
    %s130 = sor.u32 %s128, %s129
    %p131 = scmp.eq.s32.totalorder %s130, 0
    %s133 = sadd.s32 %s132, 1
    %s134 = scalar_select %p131, %s132, %s133
    %p137 = pneg %p131
    %p138 = scmp.eq.s32.totalorder %s10, 1
    %p139 = por %p137, %p138
    %p140 = scmp.ne.s32.totalorder %s132, %s135
    %p141 = scmp.eq.s32.totalorder %s10, 0
    %p142 = por %p140, %p141
    %p143 = scmp.ne.s32.totalorder %s132, %s135
    %p144 = scmp.eq.s32.totalorder %s15, 1
    %p145 = por %p143, %p144
    %p146 = scmp.ne.s32.totalorder %s135, %s136
    %p147 = scmp.eq.s32.totalorder %s15, 0
    %p148 = por %p146, %p147
    %p149 = scmp.ne.s32.totalorder %s135, %s136
    %p150 = scmp.eq.s32.totalorder %s16, 1
    %p151 = por %p149, %p150
    %p153 = scmp.ne.s32.totalorder %s136, %s152
    %p154 = scmp.eq.s32.totalorder %s16, 0
    %p155 = por %p153, %p154
    %p156 = scmp.le.s32.totalorder 1, %s10
    %p157 = scmp.lt.s32.totalorder %s10, 3
    %p158 = pnand %p156, %p157
    %p159 = pneg %p158
    // Predicated region
    $region9: #{dcb_forward.5} parent=5 // pred_check
      _
    $region10: #{dcb_forward.5} parent=5 // pred_check_branch
      %161 = sbr.rel (%p158) target = $region12
    $region11: #{dcb_forward.5} parent=5 // pred_region
      %s162 = ssub.s32 %s10, 1
      // Predicated region
      $region13: #{dcb_forward.5} parent=11 // pred_check
        %p163 = pneg %p71
      $region14: #{dcb_forward.5} parent=11 // pred_check_branch
        %165 = sbr.rel (%p163) target = $region16
      $region15: #{dcb_forward.5} parent=11 // pred_region
        _
      $region16: #{dcb_forward.5} parent=11 // pred_fallthru
        _
      // Predicated region
      $region17: #{dcb_forward.5} parent=11 // pred_check
        %p166 = pneg %p92
      $region18: #{dcb_forward.5} parent=11 // pred_check_branch
        %168 = sbr.rel (%p166) target = $region20
      $region19: #{dcb_forward.5} parent=11 // pred_region
        _
      $region20: #{dcb_forward.5} parent=11 // pred_fallthru
        _
    $region12: #{dcb_forward.5} parent=5 // pred_fallthru
      _
    %p169 = scmp.lt.s32.totalorder %s10, 2
    // Predicated region
    $region21: #{dcb_forward.5} parent=5 // pred_check
      %p170 = pneg %p169
    $region22: #{dcb_forward.5} parent=5 // pred_check_branch
      %172 = sbr.rel (%p170) target = $region24
    $region23: #{dcb_forward.5} parent=5 // pred_region
      // Predicated region
      $region25: #{dcb_forward.5} parent=23 // pred_check
        %p173 = pneg %p44
      $region26: #{dcb_forward.5} parent=23 // pred_check_branch
        %175 = sbr.rel (%p173) target = $region28
      $region27: #{dcb_forward.5} parent=23 // pred_region
        %s176 = smul.u32 2, %s18
        %p177 = scmp.lt.s32.totalorder %s17, 1
        %s178 = scalar_select %p177, %s17, 1
        %p179 = scmp.lt.s32.totalorder %s176, 1
        %s180 = scalar_select %p179, %s176, 1
        %s181 = smul.addr %s178, 10
        %s182 = sadd.s32 %s180, %s181
        %s183 = smul.addr %s182, 8
        %s184 = scalar_lea.vmem %s0, %s183
        %s185 = smul.u32 2, %s18
      $region28: #{dcb_forward.5} parent=23 // pred_fallthru
        _
      // Predicated region
      $region29: #{dcb_forward.5} parent=23 // pred_check
        %p186 = pneg %p114
      $region30: #{dcb_forward.5} parent=23 // pred_check_branch
        %188 = sbr.rel (%p186) target = $region32
      $region31: #{dcb_forward.5} parent=23 // pred_region
        %s189 = smul.u32 2, %s18
        %p190 = scmp.lt.s32.totalorder %s17, 1
        %s191 = scalar_select %p190, %s17, 1
        %p192 = scmp.lt.s32.totalorder %s189, 1
        %s193 = scalar_select %p192, %s189, 1
        %s194 = smul.addr %s191, 2
        %s195 = sadd.s32 %s193, %s194
        %s196 = smul.addr %s195, 4
        %s197 = scalar_lea.vmem %s3, %s196
        %s198 = smul.u32 2, %s18
      $region32: #{dcb_forward.5} parent=23 // pred_fallthru
        _
    $region24: #{dcb_forward.5} parent=5 // pred_fallthru
      _
    %p199 = scmp.le.s32.totalorder 1, %s10
    %p200 = scmp.lt.s32.totalorder %s10, 3
    %p201 = pnand %p199, %p200
    %p202 = pneg %p201
    // Predicated region
    $region33: #{dcb_forward.5} parent=5 // pred_check
      _
    $region34: #{dcb_forward.5} parent=5 // pred_check_branch
      %204 = sbr.rel (%p201) target = $region36
    $region35: #{dcb_forward.5} parent=5 // pred_region
      %s205 = ssub.s32 %s10, 1
      %s206 = smul.u32 2, %s20
      %p207 = scmp.lt.s32.totalorder %s19, 1
      %s208 = scalar_select %p207, %s19, 1
      %p209 = scmp.lt.s32.totalorder %s206, 1
      %s210 = scalar_select %p209, %s206, 1
      %s211 = smul.addr %s208, 10
      %s212 = sadd.s32 %s210, %s211
      %s213 = smul.addr %s212, 8
      %s214 = scalar_lea.vmem %s0, %s213
      %p215 = pneg %p50
      %p216 = pneg %p47
      %p217 = pneg %p71
      %p218 = pneg %p68
      %p219 = pneg %p92
      %p220 = pneg %p89
      %s221 = smul.u32 2, %s20
      %p222 = scmp.lt.s32.totalorder %s19, 1
      %s223 = scalar_select %p222, %s19, 1
      %p224 = scmp.lt.s32.totalorder %s221, 1
      %s225 = scalar_select %p224, %s221, 1
      %s226 = smul.addr %s223, 2
      %s227 = sadd.s32 %s225, %s226
      %s228 = smul.addr %s227, 4
      %s229 = scalar_lea.vmem %s3, %s228
      %p230 = pneg %p120
      %p231 = pneg %p117
      %p232 = pneg %p148
      %p233 = pneg %p145
      %s234 = smul.u32 2, %s20
      %p235 = scmp.lt.s32.totalorder %s19, 1
      %s236 = scalar_select %p235, %s19, 1
      %p237 = scmp.lt.s32.totalorder %s234, 1
      %s238 = scalar_select %p237, %s234, 1
      %s239 = smul.addr %s236, 2
      %s240 = sadd.s32 %s238, %s239
      %s241 = smul.addr %s240, 4
      %s242 = scalar_lea.vmem %s4, %s241
      %s243 = smul.u32 2, %s20
      %p244 = scmp.lt.s32.totalorder %s19, 1
      %s245 = scalar_select %p244, %s19, 1
      %p246 = scmp.lt.s32.totalorder %s243, 1
      %s247 = scalar_select %p246, %s243, 1
      %s248 = smul.addr %s245, 10
      %s249 = sadd.s32 %s247, %s248
      %s250 = smul.addr %s249, 8
      %s251 = scalar_lea.vmem %s0, %s250
      %s252 = smul.u32 2, %s20
      %s253 = smul.u32 2, %s20
      %p254 = scmp.lt.s32.totalorder %s19, 1
      %s255 = scalar_select %p254, %s19, 1
      %p256 = scmp.lt.s32.totalorder %s253, 1
      %s257 = scalar_select %p256, %s253, 1
      %s258 = smul.addr %s255, 2
      %s259 = sadd.s32 %s257, %s258
      %s260 = smul.addr %s259, 4
      %s261 = scalar_lea.vmem %s3, %s260
      %s262 = smul.u32 2, %s20
      %s263 = smul.u32 2, %s20
      %p264 = scmp.lt.s32.totalorder %s19, 1
      %s265 = scalar_select %p264, %s19, 1
      %p266 = scmp.lt.s32.totalorder %s263, 1
      %s267 = scalar_select %p266, %s263, 1
      %s268 = smul.addr %s265, 2
      %s269 = sadd.s32 %s267, %s268
      %s270 = smul.addr %s269, 4
      %s271 = scalar_lea.vmem %s4, %s270
      %s272 = smul.u32 2, %s20
      %v273 = vld [vmem:[%s1] sm:$0xf]
      %v274 = vld [vmem:[%s251] sm:$0xff]
      %v275 = vld [vmem:[%s251 + $0x8] sm:$0xff]
      %v276 = vld [vmem:[%s251 + $0x10] sm:$0xff]
      %v277 = vld [vmem:[%s251 + $0x18] sm:$0xff]
      %v278 = vld [vmem:[%s251 + $0x20] sm:$0xff]
      %v279 = vld [vmem:[%s251 + $0x28] sm:$0xff]
      %v280 = vld [vmem:[%s251 + $0x30] sm:$0xff]
      %v281 = vld [vmem:[%s251 + $0x38] sm:$0xff]
      %v282 = vld [vmem:[%s251 + $0x40] sm:$0xf]
      %v283 = vld [vmem:[%s251 + $0x48] sm:$0xf]
      %v284 = vld [vmem:[%s2] sm:$0xf]
      %286 = vset.pattern.permute.xlu0 0
      %287 = vperm.xlu0 %286, %v284
      %v288 = vpop.permute.xlu0 %287
      %vm290 = vcmask 293888
      %v292 = vsel %vm290, %v273, 0
      %vm294 = vcmask 1043456
      %v296 = vsel %vm294, %v282, 0
      %v299 = vsel %vm294, %v283, 0
      %301 = vmatpush.msra.mxu0 0.0
      %302 = vmatpush.msra.mxu0 0.0
      %303 = vmatpush.msra.mxu0 0.0
      %304 = vmatpush.msra.mxu0 0.0
      %305 = vmatpush.msra.mxu0 0.0
      %306 = vmatpush.msra.mxu0 0.0
      %307 = vmatpush.msra.mxu0 0.0
      %308 = vmatpush.msra.mxu0 0.0
      %309 = vmatpush.msra.mxu0 0.0
      %310 = vmatpush.msra.mxu0 0.0
      %311 = vmatpush.msra.mxu0 0.0
      %312 = vmatpush.msra.mxu0 %v296
      %313 = vmatpush.msra.mxu0 %v280
      %314 = vmatpush.msra.mxu0 %v278
      %315 = vmatpush.msra.mxu0 %v276
      %316 = vmatpush.msra.mxu0 %v274
      %317 = vmatmul.f32.gmra.mxu0 %v292
      %v318 = vpop.f32.mrf.mxu0
      %v319 = vadd.f32 %v288, %v318
      %320 = vdwg.mxu0
      %321 = vmatpush.msra.mxu0 0.0
      %322 = vmatpush.msra.mxu0 0.0
      %323 = vmatpush.msra.mxu0 0.0
      %324 = vmatpush.msra.mxu0 0.0
      %325 = vmatpush.msra.mxu0 0.0
      %326 = vmatpush.msra.mxu0 0.0
      %327 = vmatpush.msra.mxu0 0.0
      %328 = vmatpush.msra.mxu0 0.0
      %329 = vmatpush.msra.mxu0 0.0
      %330 = vmatpush.msra.mxu0 0.0
      %331 = vmatpush.msra.mxu0 0.0
      %332 = vmatpush.msra.mxu0 %v299
      %333 = vmatpush.msra.mxu0 %v281
      %334 = vmatpush.msra.mxu0 %v279
      %335 = vmatpush.msra.mxu0 %v277
      %336 = vmatpush.msra.mxu0 %v275
      %337 = vmatmul.f32.gmra.mxu0 %v292
      %v338 = vpop.f32.mrf.mxu0
      %v339 = vadd.f32 %v288, %v338
      %340 = vdwg.mxu0
      %v341 = vld [vmem:[%s261] sm:$0xff]
      %343 = vst [vmem:[#allocation1] ss:$2 sm:$0xff] %v341
      %v344 = vld.sshfl [vmem:[#allocation1] sm:$0xff pattern:$0x75316420]
      %v345 = vld.sshfl [vmem:[#allocation1 + $0x8] sm:$0xff pattern:$0x75316420]
      %v348 = vadd.f32 %v319, %v344
      %v349 = vadd.f32 %v339, %v345
      %v352 = vrot.slane %v349, 4
      %v353 = vsel %vm294, %v348, %v352
      %355 = vst [vmem:[%s271] sm:$0xff] %v353
      %s356 = smul.u32 2, %s20
      %p357 = scmp.lt.s32.totalorder %s19, 1
      %s358 = scalar_select %p357, %s19, 1
      %p359 = scmp.lt.s32.totalorder %s356, 1
      %s360 = scalar_select %p359, %s356, 1
      %s361 = smul.addr %s358, 2
      %s362 = sadd.s32 %s360, %s361
      %s363 = smul.addr %s362, 4
      %s364 = scalar_lea.vmem %s4, %s363
      // Predicated region
      $region37: #{dcb_forward.5} parent=35 // pred_check
        %p365 = pneg %p145
      $region38: #{dcb_forward.5} parent=35 // pred_check_branch
        %367 = sbr.rel (%p365) target = $region40
      $region39: #{dcb_forward.5} parent=35 // pred_region
        %s368 = smul.u32 2, %s20
      $region40: #{dcb_forward.5} parent=35 // pred_fallthru
        _
    $region36: #{dcb_forward.5} parent=5 // pred_fallthru
      _
    %p369 = scmp.le.s32.totalorder 2, %s10
    // Predicated region
    $region41: #{dcb_forward.5} parent=5 // pred_check
      %p370 = pneg %p369
    $region42: #{dcb_forward.5} parent=5 // pred_check_branch
      %372 = sbr.rel (%p370) target = $region44
    $region43: #{dcb_forward.5} parent=5 // pred_region
      %s373 = ssub.s32 %s10, 2
      // Predicated region
      $region45: #{dcb_forward.5} parent=43 // pred_check
        %p374 = pneg %p151
      $region46: #{dcb_forward.5} parent=43 // pred_check_branch
        %376 = sbr.rel (%p374) target = $region48
      $region47: #{dcb_forward.5} parent=43 // pred_region
        %s377 = smul.u32 2, %s22
        %p378 = scmp.lt.s32.totalorder %s21, 1
        %s379 = scalar_select %p378, %s21, 1
        %p380 = scmp.lt.s32.totalorder %s377, 1
        %s381 = scalar_select %p380, %s377, 1
        %s382 = smul.addr %s379, 2
        %s383 = sadd.s32 %s381, %s382
        %s384 = smul.addr %s383, 4
        %s385 = scalar_lea.vmem %s4, %s384
      $region48: #{dcb_forward.5} parent=43 // pred_fallthru
        _
    $region44: #{dcb_forward.5} parent=5 // pred_fallthru
      _
  $region6: #{dcb_forward.5} parent=0 // loop_footer
    %s14 = sadd.s32 1, %s10
  $region7: #{dcb_forward.5} parent=0 // loop_footer_branch
    %9 = sbr.rel target = $region3
  $region8: #{dcb_forward.5} parent=0 // loop_exit
    _

// kernel: dcb_forward.4
$region0: #{dcb_forward.4}
  #allocation0 [shape = 'u32[]', space=smem, size = 0x4, offset = 0x4, fixed_abs, tag = 'smem constant byte address 0x4 - core index']
  #allocation1 [shape = 'u32[72,128]{1,0:T(1,128)}', space=vmem, size = 0x9000, scoped, tag = 'internal scratch']
  %s0 = inlined_call_operand.vmem [shape: f32[2,9,4,256], index: 0, kind: input, shape index: {}]
  %s1 = inlined_call_operand.vmem [shape: f32[9,4,1], index: 1, kind: input, shape index: {}]
  %s2 = inlined_call_operand.vmem [shape: f32[2,4,1], index: 2, kind: input, shape index: {}]
  %s3 = inlined_call_operand.vmem [shape: f32[9,4,4], index: 3, kind: input, shape index: {}]
  %s4 = inlined_call_operand.vmem [shape: f32[9,4,1], index: 4, kind: input, shape index: {}]
  %s5 = inlined_call_operand.vmem [shape: f32[2,4,256], index: 5, kind: output, shape index: {}]
  %s6 = sld [smem:[#allocation0]]
  $region53: #{dcb_forward.4} parent=0
    _
  %s8 = ssub.s32 1, %s6
  %s9 = scalar_select 0, %s8, %s6
  loop: start=0, step=1, limit=4
  $region2: #{dcb_forward.4} parent=0 // loop_pre_header
    _
  $region3: #{dcb_forward.4} parent=0 // loop_header
    %s11 = sphi 0, %s15
    %p12 = scmp.ge.s32.totalorder %s11, 4
    %s18 = sphi 0, %s30
    %s19 = sphi 0, %s26
    %s20 = sphi 0, %s18
    %s21 = sphi 0, %s19
    %s22 = sphi 0, %s20
    %s23 = sphi 0, %s21
    %s35 = sphi 0, %s37
    %s38 = sphi 0, %s35
    %s39 = sphi 0, %s38
    %s55 = sphi 0, %s39
    %s59 = sphi 0, %s59
    %s61 = sphi 0, %s59
    %s62 = sphi 0, %s61
    %s76 = sphi 0, %s62
    %s82 = sphi 0, %s84
    %s85 = sphi 0, %s82
    %s86 = sphi 0, %s85
    %s102 = sphi 0, %s86
    %s106 = sphi 0, %s106
    %s108 = sphi 0, %s106
    %s109 = sphi 0, %s108
    %s123 = sphi 0, %s109
    %s127 = sphi 0, %s127
    %s129 = sphi 0, %s127
    %s130 = sphi 0, %s129
    %s144 = sphi 0, %s130
    %s152 = sphi 0, %s154
    %s155 = sphi 0, %s152
    %s156 = sphi 0, %s155
    %s172 = sphi 0, %s156
  $region4: #{dcb_forward.4} parent=0 // loop_header_branch
    %14 = sbr.rel (%p12) target = $region8
  $region5: #{dcb_forward.4} parent=0 // loop_body
    %s16 = ssub.s32 %s11, 1
    %s17 = ssub.s32 %s11, 2
    %s24 = sadd.s32 1, %s19
    %p25 = scmp.ge.s32.totalorder %s24, 1
    %s26 = scalar_select %p25, 0, %s24
    %s27 = sadd.s32 1, %s18
    %s28 = scalar_select %p25, %s27, %s18
    %p29 = scmp.ge.s32.totalorder %s28, 2
    %s30 = scalar_select %p29, 0, %s28
    %s31 = ssub.s32 %s18, %s30
    %s32 = ssub.s32 %s19, %s26
    %s33 = sor.u32 %s31, %s32
    %p34 = scmp.eq.s32.totalorder %s33, 0
    %s36 = sadd.s32 %s35, 1
    %s37 = scalar_select %p34, %s35, %s36
    %p40 = pneg %p34
    %p41 = scmp.eq.s32.totalorder %s11, 1
    %p42 = por %p40, %p41
    %p43 = scmp.ne.s32.totalorder %s35, %s38
    %p44 = scmp.eq.s32.totalorder %s11, 0
    %p45 = por %p43, %p44
    %p46 = scmp.ne.s32.totalorder %s35, %s38
    %p47 = scmp.eq.s32.totalorder %s16, 1
    %p48 = por %p46, %p47
    %p49 = scmp.ne.s32.totalorder %s38, %s39
    %p50 = scmp.eq.s32.totalorder %s16, 0
    %p51 = por %p49, %p50
    %p52 = scmp.ne.s32.totalorder %s38, %s39
    %p53 = scmp.eq.s32.totalorder %s17, 1
    %p54 = por %p52, %p53
    %p56 = scmp.ne.s32.totalorder %s39, %s55
    %p57 = scmp.eq.s32.totalorder %s17, 0
    %p58 = por %p56, %p57
    %s60 = sadd.s32 %s59, 1
    %p63 = scmp.eq.s32.totalorder %s11, 1
    %p64 = scmp.ne.s32.totalorder %s59, %s61
    %p65 = scmp.eq.s32.totalorder %s11, 0
    %p66 = por %p64, %p65
    %p67 = scmp.ne.s32.totalorder %s59, %s61
    %p68 = scmp.eq.s32.totalorder %s16, 1
    %p69 = por %p67, %p68
    %p70 = scmp.ne.s32.totalorder %s61, %s62
    %p71 = scmp.eq.s32.totalorder %s16, 0
    %p72 = por %p70, %p71
    %p73 = scmp.ne.s32.totalorder %s61, %s62
    %p74 = scmp.eq.s32.totalorder %s17, 1
    %p75 = por %p73, %p74
    %p77 = scmp.ne.s32.totalorder %s62, %s76
    %p78 = scmp.eq.s32.totalorder %s17, 0
    %p79 = por %p77, %p78
    %s80 = ssub.s32 %s18, %s30
    %p81 = scmp.eq.s32.totalorder %s80, 0
    %s83 = sadd.s32 %s82, 1
    %s84 = scalar_select %p81, %s82, %s83
    %p87 = pneg %p81
    %p88 = scmp.eq.s32.totalorder %s11, 1
    %p89 = por %p87, %p88
    %p90 = scmp.ne.s32.totalorder %s82, %s85
    %p91 = scmp.eq.s32.totalorder %s11, 0
    %p92 = por %p90, %p91
    %p93 = scmp.ne.s32.totalorder %s82, %s85
    %p94 = scmp.eq.s32.totalorder %s16, 1
    %p95 = por %p93, %p94
    %p96 = scmp.ne.s32.totalorder %s85, %s86
    %p97 = scmp.eq.s32.totalorder %s16, 0
    %p98 = por %p96, %p97
    %p99 = scmp.ne.s32.totalorder %s85, %s86
    %p100 = scmp.eq.s32.totalorder %s17, 1
    %p101 = por %p99, %p100
    %p103 = scmp.ne.s32.totalorder %s86, %s102
    %p104 = scmp.eq.s32.totalorder %s17, 0
    %p105 = por %p103, %p104
    %s107 = sadd.s32 %s106, 1
    %p110 = scmp.eq.s32.totalorder %s11, 1
    %p111 = scmp.ne.s32.totalorder %s106, %s108
    %p112 = scmp.eq.s32.totalorder %s11, 0
    %p113 = por %p111, %p112
    %p114 = scmp.ne.s32.totalorder %s106, %s108
    %p115 = scmp.eq.s32.totalorder %s16, 1
    %p116 = por %p114, %p115
    %p117 = scmp.ne.s32.totalorder %s108, %s109
    %p118 = scmp.eq.s32.totalorder %s16, 0
    %p119 = por %p117, %p118
    %p120 = scmp.ne.s32.totalorder %s108, %s109
    %p121 = scmp.eq.s32.totalorder %s17, 1
    %p122 = por %p120, %p121
    %p124 = scmp.ne.s32.totalorder %s109, %s123
    %p125 = scmp.eq.s32.totalorder %s17, 0
    %p126 = por %p124, %p125
    %s128 = sadd.s32 %s127, 1
    %p131 = scmp.eq.s32.totalorder %s11, 1
    %p132 = scmp.ne.s32.totalorder %s127, %s129
    %p133 = scmp.eq.s32.totalorder %s11, 0
    %p134 = por %p132, %p133
    %p135 = scmp.ne.s32.totalorder %s127, %s129
    %p136 = scmp.eq.s32.totalorder %s16, 1
    %p137 = por %p135, %p136
    %p138 = scmp.ne.s32.totalorder %s129, %s130
    %p139 = scmp.eq.s32.totalorder %s16, 0
    %p140 = por %p138, %p139
    %p141 = scmp.ne.s32.totalorder %s129, %s130
    %p142 = scmp.eq.s32.totalorder %s17, 1
    %p143 = por %p141, %p142
    %p145 = scmp.ne.s32.totalorder %s130, %s144
    %p146 = scmp.eq.s32.totalorder %s17, 0
    %p147 = por %p145, %p146
    %s148 = ssub.s32 %s18, %s30
    %s149 = ssub.s32 %s19, %s26
    %s150 = sor.u32 %s148, %s149
    %p151 = scmp.eq.s32.totalorder %s150, 0
    %s153 = sadd.s32 %s152, 1
    %s154 = scalar_select %p151, %s152, %s153
    %p157 = pneg %p151
    %p158 = scmp.eq.s32.totalorder %s11, 1
    %p159 = por %p157, %p158
    %p160 = scmp.ne.s32.totalorder %s152, %s155
    %p161 = scmp.eq.s32.totalorder %s11, 0
    %p162 = por %p160, %p161
    %p163 = scmp.ne.s32.totalorder %s152, %s155
    %p164 = scmp.eq.s32.totalorder %s16, 1
    %p165 = por %p163, %p164
    %p166 = scmp.ne.s32.totalorder %s155, %s156
    %p167 = scmp.eq.s32.totalorder %s16, 0
    %p168 = por %p166, %p167
    %p169 = scmp.ne.s32.totalorder %s155, %s156
    %p170 = scmp.eq.s32.totalorder %s17, 1
    %p171 = por %p169, %p170
    %p173 = scmp.ne.s32.totalorder %s156, %s172
    %p174 = scmp.eq.s32.totalorder %s17, 0
    %p175 = por %p173, %p174
    %p176 = scmp.le.s32.totalorder 1, %s11
    %p177 = scmp.lt.s32.totalorder %s11, 3
    %p178 = pnand %p176, %p177
    %p179 = pneg %p178
    // Predicated region
    $region9: #{dcb_forward.4} parent=5 // pred_check
      _
    $region10: #{dcb_forward.4} parent=5 // pred_check_branch
      %181 = sbr.rel (%p178) target = $region12
    $region11: #{dcb_forward.4} parent=5 // pred_region
      %s182 = ssub.s32 %s11, 1
      // Predicated region
      $region13: #{dcb_forward.4} parent=11 // pred_check
        %p183 = pneg %p72
      $region14: #{dcb_forward.4} parent=11 // pred_check_branch
        %185 = sbr.rel (%p183) target = $region16
      $region15: #{dcb_forward.4} parent=11 // pred_region
        _
      $region16: #{dcb_forward.4} parent=11 // pred_fallthru
        _
      // Predicated region
      $region17: #{dcb_forward.4} parent=11 // pred_check
        %p186 = pneg %p119
      $region18: #{dcb_forward.4} parent=11 // pred_check_branch
        %188 = sbr.rel (%p186) target = $region20
      $region19: #{dcb_forward.4} parent=11 // pred_region
        _
      $region20: #{dcb_forward.4} parent=11 // pred_fallthru
        _
      // Predicated region
      $region21: #{dcb_forward.4} parent=11 // pred_check
        %p189 = pneg %p140
      $region22: #{dcb_forward.4} parent=11 // pred_check_branch
        %191 = sbr.rel (%p189) target = $region24
      $region23: #{dcb_forward.4} parent=11 // pred_region
        _
      $region24: #{dcb_forward.4} parent=11 // pred_fallthru
        _
    $region12: #{dcb_forward.4} parent=5 // pred_fallthru
      _
    %p192 = scmp.lt.s32.totalorder %s11, 2
    // Predicated region
    $region25: #{dcb_forward.4} parent=5 // pred_check
      %p193 = pneg %p192
    $region26: #{dcb_forward.4} parent=5 // pred_check_branch
      %195 = sbr.rel (%p193) target = $region28
    $region27: #{dcb_forward.4} parent=5 // pred_region
      // Predicated region
      $region29: #{dcb_forward.4} parent=27 // pred_check
        %p196 = pneg %p45
      $region30: #{dcb_forward.4} parent=27 // pred_check_branch
        %198 = sbr.rel (%p196) target = $region32
      $region31: #{dcb_forward.4} parent=27 // pred_region
        %s199 = smul.u32 2, %s19
        %p200 = scmp.lt.s32.totalorder %s18, 1
        %s201 = scalar_select %p200, %s18, 1
        %p202 = scmp.lt.s32.totalorder %s199, 1
        %s203 = scalar_select %p202, %s199, 1
        %s204 = smul.addr %s201, 18
        %s205 = sadd.s32 %s203, %s204
        %s206 = smul.addr %s205, 4
        %s207 = scalar_lea.vmem %s0, %s206
        %s208 = smul.u32 2, %s19
      $region32: #{dcb_forward.4} parent=27 // pred_fallthru
        _
      // Predicated region
      $region33: #{dcb_forward.4} parent=27 // pred_check
        %p209 = pneg %p92
      $region34: #{dcb_forward.4} parent=27 // pred_check_branch
        %211 = sbr.rel (%p209) target = $region36
      $region35: #{dcb_forward.4} parent=27 // pred_region
        %p212 = scmp.lt.s32.totalorder %s18, 1
        %s213 = scalar_select %p212, %s18, 1
        %s214 = smul.addr %s213, 4
        %s215 = scalar_lea.vmem %s2, %s214
      $region36: #{dcb_forward.4} parent=27 // pred_fallthru
        _
    $region28: #{dcb_forward.4} parent=5 // pred_fallthru
      _
    %p216 = scmp.le.s32.totalorder 1, %s11
    %p217 = scmp.lt.s32.totalorder %s11, 3
    %p218 = pnand %p216, %p217
    %p219 = pneg %p218
    // Predicated region
    $region37: #{dcb_forward.4} parent=5 // pred_check
      _
    $region38: #{dcb_forward.4} parent=5 // pred_check_branch
      %221 = sbr.rel (%p218) target = $region40
    $region39: #{dcb_forward.4} parent=5 // pred_region
      %s222 = ssub.s32 %s11, 1
      %s223 = smul.u32 2, %s21
      %p224 = scmp.lt.s32.totalorder %s20, 1
      %s225 = scalar_select %p224, %s20, 1
      %p226 = scmp.lt.s32.totalorder %s223, 1
      %s227 = scalar_select %p226, %s223, 1
      %s228 = smul.addr %s225, 18
      %s229 = sadd.s32 %s227, %s228
      %s230 = smul.addr %s229, 4
      %s231 = scalar_lea.vmem %s0, %s230
      %p232 = pneg %p51
      %p233 = pneg %p48
      %p234 = pneg %p72
      %p235 = pneg %p69
      %p236 = scmp.lt.s32.totalorder %s20, 1
      %s237 = scalar_select %p236, %s20, 1
      %s238 = smul.addr %s237, 4
      %s239 = scalar_lea.vmem %s2, %s238
      %p240 = pneg %p98
      %p241 = pneg %p95
      %p242 = pneg %p119
      %p243 = pneg %p116
      %p244 = pneg %p140
      %p245 = pneg %p137
      %p246 = pneg %p168
      %p247 = pneg %p165
      %s248 = smul.u32 2, %s21
      %p249 = scmp.lt.s32.totalorder %s20, 1
      %s250 = scalar_select %p249, %s20, 1
      %p251 = scmp.lt.s32.totalorder %s248, 1
      %s252 = scalar_select %p251, %s248, 1
      %s253 = smul.addr %s250, 2
      %s254 = sadd.s32 %s252, %s253
      %s255 = smul.addr %s254, 4
      %s256 = scalar_lea.vmem %s5, %s255
      %s257 = smul.u32 2, %s21
      %p258 = scmp.lt.s32.totalorder %s20, 1
      %s259 = scalar_select %p258, %s20, 1
      %p260 = scmp.lt.s32.totalorder %s257, 1
      %s261 = scalar_select %p260, %s257, 1
      %s262 = smul.addr %s259, 18
      %s263 = sadd.s32 %s261, %s262
      %s264 = smul.addr %s263, 4
      %s265 = scalar_lea.vmem %s0, %s264
      %s266 = smul.u32 2, %s21
      %p267 = scmp.lt.s32.totalorder %s20, 1
      %s268 = scalar_select %p267, %s20, 1
      %s269 = smul.addr %s268, 4
      %s270 = scalar_lea.vmem %s2, %s269
      %s271 = smul.u32 2, %s21
      %p272 = scmp.lt.s32.totalorder %s20, 1
      %s273 = scalar_select %p272, %s20, 1
      %p274 = scmp.lt.s32.totalorder %s271, 1
      %s275 = scalar_select %p274, %s271, 1
      %s276 = smul.addr %s273, 2
      %s277 = sadd.s32 %s275, %s276
      %s278 = smul.addr %s277, 4
      %s279 = scalar_lea.vmem %s5, %s278
      %s280 = smul.u32 2, %s21
      %v281 = vld [vmem:[%s270] sm:$0xf]
      %v282 = vld [vmem:[%s265] sm:$0xff]
      %v283 = vld [vmem:[%s1] sm:$0xf]
      %285 = vset.pattern.permute.xlu0 0
      %286 = vperm.xlu0 %285, %v283
      %v287 = vpop.permute.xlu0 %286
      %v289 = vunpack.c.l.s4 839922192
      %v290 = vunpack.c.0.s8 %v289
      %v291 = vperm.slane %v287, %v290
      %v293 = vmul.f32 %v282, %v291
      %295 = vset.pattern.permute.xlu0 0
      %296 = vperm.xlu0 %295, %v281
      %v297 = vpop.permute.xlu0 %296
      %300 = vst [vmem:[#allocation1] ss:$2 sm:$0xff] %v293
      %v301 = vld.sshfl [vmem:[#allocation1] sm:$0xff pattern:$0x75316420]
      %v302 = vld.sshfl [vmem:[#allocation1 + $0x8] sm:$0xff pattern:$0x75316420]
      %v305 = vadd.f32 %v297, %v301
      %v306 = vadd.f32 %v297, %v302
      %s307 = scalar_lea.vmem %s265, 8
      %v308 = vld [vmem:[%s307] sm:$0xff]
      %s309 = scalar_lea.vmem %s1, 4
      %v310 = vld [vmem:[%s309] sm:$0xf]
      %312 = vset.pattern.permute.xlu0 0
      %313 = vperm.xlu0 %312, %v310
      %v314 = vpop.permute.xlu0 %313
      %v316 = vunpack.c.l.s4 839922192
      %v317 = vunpack.c.0.s8 %v316
      %v318 = vperm.slane %v314, %v317
      %v320 = vmul.f32 %v308, %v318
      %322 = vst [vmem:[#allocation1] ss:$2 sm:$0xff] %v320
      %v323 = vld.sshfl [vmem:[#allocation1] sm:$0xff pattern:$0x75316420]
      %v324 = vld.sshfl [vmem:[#allocation1 + $0x8] sm:$0xff pattern:$0x75316420]
      %v327 = vadd.f32 %v305, %v323
      %v328 = vadd.f32 %v306, %v324
      %s329 = scalar_lea.vmem %s265, 16
      %v330 = vld [vmem:[%s329] sm:$0xff]
      %s331 = scalar_lea.vmem %s1, 8
      %v332 = vld [vmem:[%s331] sm:$0xf]
      %334 = vset.pattern.permute.xlu0 0
      %335 = vperm.xlu0 %334, %v332
      %v336 = vpop.permute.xlu0 %335
      %v338 = vunpack.c.l.s4 839922192
      %v339 = vunpack.c.0.s8 %v338
      %v340 = vperm.slane %v336, %v339
      %v342 = vmul.f32 %v330, %v340
      %344 = vst [vmem:[#allocation1] ss:$2 sm:$0xff] %v342
      %v345 = vld.sshfl [vmem:[#allocation1] sm:$0xff pattern:$0x75316420]
      %v346 = vld.sshfl [vmem:[#allocation1 + $0x8] sm:$0xff pattern:$0x75316420]
      %v349 = vadd.f32 %v327, %v345
      %v350 = vadd.f32 %v328, %v346
      %s351 = scalar_lea.vmem %s265, 24
      %v352 = vld [vmem:[%s351] sm:$0xff]
      %s353 = scalar_lea.vmem %s1, 12
      %v354 = vld [vmem:[%s353] sm:$0xf]
      %356 = vset.pattern.permute.xlu0 0
      %357 = vperm.xlu0 %356, %v354
      %v358 = vpop.permute.xlu0 %357
      %v360 = vunpack.c.l.s4 839922192
      %v361 = vunpack.c.0.s8 %v360
      %v362 = vperm.slane %v358, %v361
      %v364 = vmul.f32 %v352, %v362
      %366 = vst [vmem:[#allocation1] ss:$2 sm:$0xff] %v364
      %v367 = vld.sshfl [vmem:[#allocation1] sm:$0xff pattern:$0x75316420]
      %v368 = vld.sshfl [vmem:[#allocation1 + $0x8] sm:$0xff pattern:$0x75316420]
      %v371 = vadd.f32 %v349, %v367
      %v372 = vadd.f32 %v350, %v368
      %s373 = scalar_lea.vmem %s265, 32
      %v374 = vld [vmem:[%s373] sm:$0xff]
      %s375 = scalar_lea.vmem %s1, 16
      %v376 = vld [vmem:[%s375] sm:$0xf]
      %378 = vset.pattern.permute.xlu0 0
      %379 = vperm.xlu0 %378, %v376
      %v380 = vpop.permute.xlu0 %379
      %v382 = vunpack.c.l.s4 839922192
      %v383 = vunpack.c.0.s8 %v382
      %v384 = vperm.slane %v380, %v383
      %v386 = vmul.f32 %v374, %v384
      %388 = vst [vmem:[#allocation1] ss:$2 sm:$0xff] %v386
      %v389 = vld.sshfl [vmem:[#allocation1] sm:$0xff pattern:$0x75316420]
      %v390 = vld.sshfl [vmem:[#allocation1 + $0x8] sm:$0xff pattern:$0x75316420]
      %v393 = vadd.f32 %v371, %v389
      %v394 = vadd.f32 %v372, %v390
      %s395 = scalar_lea.vmem %s265, 40
      %v396 = vld [vmem:[%s395] sm:$0xff]
      %s397 = scalar_lea.vmem %s1, 20
      %v398 = vld [vmem:[%s397] sm:$0xf]
      %400 = vset.pattern.permute.xlu0 0
      %401 = vperm.xlu0 %400, %v398
      %v402 = vpop.permute.xlu0 %401
      %v404 = vunpack.c.l.s4 839922192
      %v405 = vunpack.c.0.s8 %v404
      %v406 = vperm.slane %v402, %v405
      %v408 = vmul.f32 %v396, %v406
      %410 = vst [vmem:[#allocation1] ss:$2 sm:$0xff] %v408
      %v411 = vld.sshfl [vmem:[#allocation1] sm:$0xff pattern:$0x75316420]
      %v412 = vld.sshfl [vmem:[#allocation1 + $0x8] sm:$0xff pattern:$0x75316420]
      %v415 = vadd.f32 %v393, %v411
      %v416 = vadd.f32 %v394, %v412
      %s417 = scalar_lea.vmem %s265, 48
      %v418 = vld [vmem:[%s417] sm:$0xff]
      %s419 = scalar_lea.vmem %s1, 24
      %v420 = vld [vmem:[%s419] sm:$0xf]
      %422 = vset.pattern.permute.xlu0 0
      %423 = vperm.xlu0 %422, %v420
      %v424 = vpop.permute.xlu0 %423
      %v426 = vunpack.c.l.s4 839922192
      %v427 = vunpack.c.0.s8 %v426
      %v428 = vperm.slane %v424, %v427
      %v430 = vmul.f32 %v418, %v428
      %432 = vst [vmem:[#allocation1] ss:$2 sm:$0xff] %v430
      %v433 = vld.sshfl [vmem:[#allocation1] sm:$0xff pattern:$0x75316420]
      %v434 = vld.sshfl [vmem:[#allocation1 + $0x8] sm:$0xff pattern:$0x75316420]
      %v437 = vadd.f32 %v415, %v433
      %v438 = vadd.f32 %v416, %v434
      %s439 = scalar_lea.vmem %s265, 56
      %v440 = vld [vmem:[%s439] sm:$0xff]
      %s441 = scalar_lea.vmem %s1, 28
      %v442 = vld [vmem:[%s441] sm:$0xf]
      %444 = vset.pattern.permute.xlu0 0
      %445 = vperm.xlu0 %444, %v442
      %v446 = vpop.permute.xlu0 %445
      %v448 = vunpack.c.l.s4 839922192
      %v449 = vunpack.c.0.s8 %v448
      %v450 = vperm.slane %v446, %v449
      %v452 = vmul.f32 %v440, %v450
      %454 = vst [vmem:[#allocation1] ss:$2 sm:$0xff] %v452
      %v455 = vld.sshfl [vmem:[#allocation1] sm:$0xff pattern:$0x75316420]
      %v456 = vld.sshfl [vmem:[#allocation1 + $0x8] sm:$0xff pattern:$0x75316420]
      %v459 = vadd.f32 %v437, %v455
      %v460 = vadd.f32 %v438, %v456
      %s461 = scalar_lea.vmem %s265, 64
      %v462 = vld [vmem:[%s461] sm:$0xff]
      %s463 = scalar_lea.vmem %s1, 32
      %v464 = vld [vmem:[%s463] sm:$0xf]
      %466 = vset.pattern.permute.xlu0 0
      %467 = vperm.xlu0 %466, %v464
      %v468 = vpop.permute.xlu0 %467
      %v470 = vunpack.c.l.s4 839922192
      %v471 = vunpack.c.0.s8 %v470
      %v472 = vperm.slane %v468, %v471
      %v474 = vmul.f32 %v462, %v472
      %476 = vst [vmem:[#allocation1] ss:$2 sm:$0xff] %v474
      %v477 = vld.sshfl [vmem:[#allocation1] sm:$0xff pattern:$0x75316420]
      %v478 = vld.sshfl [vmem:[#allocation1 + $0x8] sm:$0xff pattern:$0x75316420]
      %v481 = vadd.f32 %v459, %v477
      %v482 = vadd.f32 %v460, %v478
      %v483 = vld [vmem:[%s3] sm:$0xf]
      %v484 = vld [vmem:[%s4] sm:$0xf]
      %486 = vset.pattern.permute.xlu0 0
      %487 = vperm.xlu0 %486, %v484
      %v488 = vpop.permute.xlu0 %487
      %vm490 = vcmask 31744
      %v492 = vsel %vm490, %v483, 0
      %vm494 = vcmask 1043456
      %v496 = vsel %vm494, %v481, 0
      %v499 = vsel %vm494, %v482, 0
      %501 = vmatpush.msra.mxu0 0.0
      %502 = vmatpush.msra.mxu0 0.0
      %503 = vmatpush.msra.mxu0 0.0
      %504 = vmatpush.msra.mxu0 0.0
      %505 = vmatpush.msra.mxu0 0.0
      %506 = vmatpush.msra.mxu0 0.0
      %507 = vmatpush.msra.mxu0 0.0
      %508 = vmatpush.msra.mxu0 0.0
      %509 = vmatpush.msra.mxu0 0.0
      %510 = vmatpush.msra.mxu0 0.0
      %511 = vmatpush.msra.mxu0 0.0
      %512 = vmatpush.msra.mxu0 0.0
      %513 = vmatpush.msra.mxu0 0.0
      %514 = vmatpush.msra.mxu0 0.0
      %515 = vmatpush.msra.mxu0 0.0
      %516 = vmatpush.msra.mxu0 %v496
      %517 = vmatmul.f32.gmra.mxu0 %v492
      %v518 = vpop.f32.mrf.mxu0
      %v519 = vadd.f32 %v488, %v518
      %520 = vdwg.mxu0
      %521 = vmatpush.msra.mxu0 0.0
      %522 = vmatpush.msra.mxu0 0.0
      %523 = vmatpush.msra.mxu0 0.0
      %524 = vmatpush.msra.mxu0 0.0
      %525 = vmatpush.msra.mxu0 0.0
      %526 = vmatpush.msra.mxu0 0.0
      %527 = vmatpush.msra.mxu0 0.0
      %528 = vmatpush.msra.mxu0 0.0
      %529 = vmatpush.msra.mxu0 0.0
      %530 = vmatpush.msra.mxu0 0.0
      %531 = vmatpush.msra.mxu0 0.0
      %532 = vmatpush.msra.mxu0 0.0
      %533 = vmatpush.msra.mxu0 0.0
      %534 = vmatpush.msra.mxu0 0.0
      %535 = vmatpush.msra.mxu0 0.0
      %536 = vmatpush.msra.mxu0 %v499
      %537 = vmatmul.f32.gmra.mxu0 %v492
      %v538 = vpop.f32.mrf.mxu0
      %v539 = vadd.f32 %v488, %v538
      %540 = vdwg.mxu0
      %v543 = vrot.slane %v539, 4
      %v544 = vsel %vm494, %v519, %v543
      %v546 = vmul.f32 %v282, %v544
      %s547 = scalar_lea.vmem %s3, 4
      %v548 = vld [vmem:[%s547] sm:$0xf]
      %s549 = scalar_lea.vmem %s4, 4
      %v550 = vld [vmem:[%s549] sm:$0xf]
      %552 = vset.pattern.permute.xlu0 0
      %553 = vperm.xlu0 %552, %v550
      %v554 = vpop.permute.xlu0 %553
      %v557 = vsel %vm490, %v548, 0
      %559 = vmatpush.msra.mxu0 0.0
      %560 = vmatpush.msra.mxu0 0.0
      %561 = vmatpush.msra.mxu0 0.0
      %562 = vmatpush.msra.mxu0 0.0
      %563 = vmatpush.msra.mxu0 0.0
      %564 = vmatpush.msra.mxu0 0.0
      %565 = vmatpush.msra.mxu0 0.0
      %566 = vmatpush.msra.mxu0 0.0
      %567 = vmatpush.msra.mxu0 0.0
      %568 = vmatpush.msra.mxu0 0.0
      %569 = vmatpush.msra.mxu0 0.0
      %570 = vmatpush.msra.mxu0 0.0
      %571 = vmatpush.msra.mxu0 0.0
      %572 = vmatpush.msra.mxu0 0.0
      %573 = vmatpush.msra.mxu0 0.0
      %574 = vmatpush.msra.mxu0 %v496
      %575 = vmatmul.f32.gmra.mxu0 %v557
      %v576 = vpop.f32.mrf.mxu0
      %v577 = vadd.f32 %v554, %v576
      %578 = vdwg.mxu0
      %579 = vmatpush.msra.mxu0 0.0
      %580 = vmatpush.msra.mxu0 0.0
      %581 = vmatpush.msra.mxu0 0.0
      %582 = vmatpush.msra.mxu0 0.0
      %583 = vmatpush.msra.mxu0 0.0
      %584 = vmatpush.msra.mxu0 0.0
      %585 = vmatpush.msra.mxu0 0.0
      %586 = vmatpush.msra.mxu0 0.0
      %587 = vmatpush.msra.mxu0 0.0
      %588 = vmatpush.msra.mxu0 0.0
      %589 = vmatpush.msra.mxu0 0.0
      %590 = vmatpush.msra.mxu0 0.0
      %591 = vmatpush.msra.mxu0 0.0
      %592 = vmatpush.msra.mxu0 0.0
      %593 = vmatpush.msra.mxu0 0.0
      %594 = vmatpush.msra.mxu0 %v499
      %595 = vmatmul.f32.gmra.mxu0 %v557
      %v596 = vpop.f32.mrf.mxu0
      %v597 = vadd.f32 %v554, %v596
      %598 = vdwg.mxu0
      %v601 = vrot.slane %v597, 4
      %v602 = vsel %vm494, %v577, %v601
      %v604 = vmul.f32 %v308, %v602
      %v605 = vadd.f32 %v546, %v604
      %s606 = scalar_lea.vmem %s3, 8
      %v607 = vld [vmem:[%s606] sm:$0xf]
      %s608 = scalar_lea.vmem %s4, 8
      %v609 = vld [vmem:[%s608] sm:$0xf]
      %611 = vset.pattern.permute.xlu0 0
      %612 = vperm.xlu0 %611, %v609
      %v613 = vpop.permute.xlu0 %612
      %v616 = vsel %vm490, %v607, 0
      %618 = vmatpush.msra.mxu0 0.0
      %619 = vmatpush.msra.mxu0 0.0
      %620 = vmatpush.msra.mxu0 0.0
      %621 = vmatpush.msra.mxu0 0.0
      %622 = vmatpush.msra.mxu0 0.0
      %623 = vmatpush.msra.mxu0 0.0
      %624 = vmatpush.msra.mxu0 0.0
      %625 = vmatpush.msra.mxu0 0.0
      %626 = vmatpush.msra.mxu0 0.0
      %627 = vmatpush.msra.mxu0 0.0
      %628 = vmatpush.msra.mxu0 0.0
      %629 = vmatpush.msra.mxu0 0.0
      %630 = vmatpush.msra.mxu0 0.0
      %631 = vmatpush.msra.mxu0 0.0
      %632 = vmatpush.msra.mxu0 0.0
      %633 = vmatpush.msra.mxu0 %v496
      %634 = vmatmul.f32.gmra.mxu0 %v616
      %v635 = vpop.f32.mrf.mxu0
      %v636 = vadd.f32 %v613, %v635
      %637 = vdwg.mxu0
      %638 = vmatpush.msra.mxu0 0.0
      %639 = vmatpush.msra.mxu0 0.0
      %640 = vmatpush.msra.mxu0 0.0
      %641 = vmatpush.msra.mxu0 0.0
      %642 = vmatpush.msra.mxu0 0.0
      %643 = vmatpush.msra.mxu0 0.0
      %644 = vmatpush.msra.mxu0 0.0
      %645 = vmatpush.msra.mxu0 0.0
      %646 = vmatpush.msra.mxu0 0.0
      %647 = vmatpush.msra.mxu0 0.0
      %648 = vmatpush.msra.mxu0 0.0
      %649 = vmatpush.msra.mxu0 0.0
      %650 = vmatpush.msra.mxu0 0.0
      %651 = vmatpush.msra.mxu0 0.0
      %652 = vmatpush.msra.mxu0 0.0
      %653 = vmatpush.msra.mxu0 %v499
      %654 = vmatmul.f32.gmra.mxu0 %v616
      %v655 = vpop.f32.mrf.mxu0
      %v656 = vadd.f32 %v613, %v655
      %657 = vdwg.mxu0
      %v660 = vrot.slane %v656, 4
      %v661 = vsel %vm494, %v636, %v660
      %v663 = vmul.f32 %v330, %v661
      %v664 = vadd.f32 %v605, %v663
      %s665 = scalar_lea.vmem %s3, 12
      %v666 = vld [vmem:[%s665] sm:$0xf]
      %s667 = scalar_lea.vmem %s4, 12
      %v668 = vld [vmem:[%s667] sm:$0xf]
      %670 = vset.pattern.permute.xlu0 0
      %671 = vperm.xlu0 %670, %v668
      %v672 = vpop.permute.xlu0 %671
      %v675 = vsel %vm490, %v666, 0
      %677 = vmatpush.msra.mxu0 0.0
      %678 = vmatpush.msra.mxu0 0.0
      %679 = vmatpush.msra.mxu0 0.0
      %680 = vmatpush.msra.mxu0 0.0
      %681 = vmatpush.msra.mxu0 0.0
      %682 = vmatpush.msra.mxu0 0.0
      %683 = vmatpush.msra.mxu0 0.0
      %684 = vmatpush.msra.mxu0 0.0
      %685 = vmatpush.msra.mxu0 0.0
      %686 = vmatpush.msra.mxu0 0.0
      %687 = vmatpush.msra.mxu0 0.0
      %688 = vmatpush.msra.mxu0 0.0
      %689 = vmatpush.msra.mxu0 0.0
      %690 = vmatpush.msra.mxu0 0.0
      %691 = vmatpush.msra.mxu0 0.0
      %692 = vmatpush.msra.mxu0 %v496
      %693 = vmatmul.f32.gmra.mxu0 %v675
      %v694 = vpop.f32.mrf.mxu0
      %v695 = vadd.f32 %v672, %v694
      %696 = vdwg.mxu0
      %697 = vmatpush.msra.mxu0 0.0
      %698 = vmatpush.msra.mxu0 0.0
      %699 = vmatpush.msra.mxu0 0.0
      %700 = vmatpush.msra.mxu0 0.0
      %701 = vmatpush.msra.mxu0 0.0
      %702 = vmatpush.msra.mxu0 0.0
      %703 = vmatpush.msra.mxu0 0.0
      %704 = vmatpush.msra.mxu0 0.0
      %705 = vmatpush.msra.mxu0 0.0
      %706 = vmatpush.msra.mxu0 0.0
      %707 = vmatpush.msra.mxu0 0.0
      %708 = vmatpush.msra.mxu0 0.0
      %709 = vmatpush.msra.mxu0 0.0
      %710 = vmatpush.msra.mxu0 0.0
      %711 = vmatpush.msra.mxu0 0.0
      %712 = vmatpush.msra.mxu0 %v499
      %713 = vmatmul.f32.gmra.mxu0 %v675
      %v714 = vpop.f32.mrf.mxu0
      %v715 = vadd.f32 %v672, %v714
      %716 = vdwg.mxu0
      %v719 = vrot.slane %v715, 4
      %v720 = vsel %vm494, %v695, %v719
      %v722 = vmul.f32 %v352, %v720
      %v723 = vadd.f32 %v664, %v722
      %s724 = scalar_lea.vmem %s3, 16
      %v725 = vld [vmem:[%s724] sm:$0xf]
      %s726 = scalar_lea.vmem %s4, 16
      %v727 = vld [vmem:[%s726] sm:$0xf]
      %729 = vset.pattern.permute.xlu0 0
      %730 = vperm.xlu0 %729, %v727
      %v731 = vpop.permute.xlu0 %730
      %v734 = vsel %vm490, %v725, 0
      %736 = vmatpush.msra.mxu0 0.0
      %737 = vmatpush.msra.mxu0 0.0
      %738 = vmatpush.msra.mxu0 0.0
      %739 = vmatpush.msra.mxu0 0.0
      %740 = vmatpush.msra.mxu0 0.0
      %741 = vmatpush.msra.mxu0 0.0
      %742 = vmatpush.msra.mxu0 0.0
      %743 = vmatpush.msra.mxu0 0.0
      %744 = vmatpush.msra.mxu0 0.0
      %745 = vmatpush.msra.mxu0 0.0
      %746 = vmatpush.msra.mxu0 0.0
      %747 = vmatpush.msra.mxu0 0.0
      %748 = vmatpush.msra.mxu0 0.0
      %749 = vmatpush.msra.mxu0 0.0
      %750 = vmatpush.msra.mxu0 0.0
      %751 = vmatpush.msra.mxu0 %v496
      %752 = vmatmul.f32.gmra.mxu0 %v734
      %v753 = vpop.f32.mrf.mxu0
      %v754 = vadd.f32 %v731, %v753
      %755 = vdwg.mxu0
      %756 = vmatpush.msra.mxu0 0.0
      %757 = vmatpush.msra.mxu0 0.0
      %758 = vmatpush.msra.mxu0 0.0
      %759 = vmatpush.msra.mxu0 0.0
      %760 = vmatpush.msra.mxu0 0.0
      %761 = vmatpush.msra.mxu0 0.0
      %762 = vmatpush.msra.mxu0 0.0
      %763 = vmatpush.msra.mxu0 0.0
      %764 = vmatpush.msra.mxu0 0.0
      %765 = vmatpush.msra.mxu0 0.0
      %766 = vmatpush.msra.mxu0 0.0
      %767 = vmatpush.msra.mxu0 0.0
      %768 = vmatpush.msra.mxu0 0.0
      %769 = vmatpush.msra.mxu0 0.0
      %770 = vmatpush.msra.mxu0 0.0
      %771 = vmatpush.msra.mxu0 %v499
      %772 = vmatmul.f32.gmra.mxu0 %v734
      %v773 = vpop.f32.mrf.mxu0
      %v774 = vadd.f32 %v731, %v773
      %775 = vdwg.mxu0
      %v778 = vrot.slane %v774, 4
      %v779 = vsel %vm494, %v754, %v778
      %v781 = vmul.f32 %v374, %v779
      %v782 = vadd.f32 %v723, %v781
      %s783 = scalar_lea.vmem %s3, 20
      %v784 = vld [vmem:[%s783] sm:$0xf]
      %s785 = scalar_lea.vmem %s4, 20
      %v786 = vld [vmem:[%s785] sm:$0xf]
      %788 = vset.pattern.permute.xlu0 0
      %789 = vperm.xlu0 %788, %v786
      %v790 = vpop.permute.xlu0 %789
      %v793 = vsel %vm490, %v784, 0
      %795 = vmatpush.msra.mxu0 0.0
      %796 = vmatpush.msra.mxu0 0.0
      %797 = vmatpush.msra.mxu0 0.0
      %798 = vmatpush.msra.mxu0 0.0
      %799 = vmatpush.msra.mxu0 0.0
      %800 = vmatpush.msra.mxu0 0.0
      %801 = vmatpush.msra.mxu0 0.0
      %802 = vmatpush.msra.mxu0 0.0
      %803 = vmatpush.msra.mxu0 0.0
      %804 = vmatpush.msra.mxu0 0.0
      %805 = vmatpush.msra.mxu0 0.0
      %806 = vmatpush.msra.mxu0 0.0
      %807 = vmatpush.msra.mxu0 0.0
      %808 = vmatpush.msra.mxu0 0.0
      %809 = vmatpush.msra.mxu0 0.0
      %810 = vmatpush.msra.mxu0 %v496
      %811 = vmatmul.f32.gmra.mxu0 %v793
      %v812 = vpop.f32.mrf.mxu0
      %v813 = vadd.f32 %v790, %v812
      %814 = vdwg.mxu0
      %815 = vmatpush.msra.mxu0 0.0
      %816 = vmatpush.msra.mxu0 0.0
      %817 = vmatpush.msra.mxu0 0.0
      %818 = vmatpush.msra.mxu0 0.0
      %819 = vmatpush.msra.mxu0 0.0
      %820 = vmatpush.msra.mxu0 0.0
      %821 = vmatpush.msra.mxu0 0.0
      %822 = vmatpush.msra.mxu0 0.0
      %823 = vmatpush.msra.mxu0 0.0
      %824 = vmatpush.msra.mxu0 0.0
      %825 = vmatpush.msra.mxu0 0.0
      %826 = vmatpush.msra.mxu0 0.0
      %827 = vmatpush.msra.mxu0 0.0
      %828 = vmatpush.msra.mxu0 0.0
      %829 = vmatpush.msra.mxu0 0.0
      %830 = vmatpush.msra.mxu0 %v499
      %831 = vmatmul.f32.gmra.mxu0 %v793
      %v832 = vpop.f32.mrf.mxu0
      %v833 = vadd.f32 %v790, %v832
      %834 = vdwg.mxu0
      %v837 = vrot.slane %v833, 4
      %v838 = vsel %vm494, %v813, %v837
      %v840 = vmul.f32 %v396, %v838
      %v841 = vadd.f32 %v782, %v840
      %s842 = scalar_lea.vmem %s3, 24
      %v843 = vld [vmem:[%s842] sm:$0xf]
      %s844 = scalar_lea.vmem %s4, 24
      %v845 = vld [vmem:[%s844] sm:$0xf]
      %847 = vset.pattern.permute.xlu0 0
      %848 = vperm.xlu0 %847, %v845
      %v849 = vpop.permute.xlu0 %848
      %v852 = vsel %vm490, %v843, 0
      %854 = vmatpush.msra.mxu0 0.0
      %855 = vmatpush.msra.mxu0 0.0
      %856 = vmatpush.msra.mxu0 0.0
      %857 = vmatpush.msra.mxu0 0.0
      %858 = vmatpush.msra.mxu0 0.0
      %859 = vmatpush.msra.mxu0 0.0
      %860 = vmatpush.msra.mxu0 0.0
      %861 = vmatpush.msra.mxu0 0.0
      %862 = vmatpush.msra.mxu0 0.0
      %863 = vmatpush.msra.mxu0 0.0
      %864 = vmatpush.msra.mxu0 0.0
      %865 = vmatpush.msra.mxu0 0.0
      %866 = vmatpush.msra.mxu0 0.0
      %867 = vmatpush.msra.mxu0 0.0
      %868 = vmatpush.msra.mxu0 0.0
      %869 = vmatpush.msra.mxu0 %v496
      %870 = vmatmul.f32.gmra.mxu0 %v852
      %v871 = vpop.f32.mrf.mxu0
      %v872 = vadd.f32 %v849, %v871
      %873 = vdwg.mxu0
      %874 = vmatpush.msra.mxu0 0.0
      %875 = vmatpush.msra.mxu0 0.0
      %876 = vmatpush.msra.mxu0 0.0
      %877 = vmatpush.msra.mxu0 0.0
      %878 = vmatpush.msra.mxu0 0.0
      %879 = vmatpush.msra.mxu0 0.0
      %880 = vmatpush.msra.mxu0 0.0
      %881 = vmatpush.msra.mxu0 0.0
      %882 = vmatpush.msra.mxu0 0.0
      %883 = vmatpush.msra.mxu0 0.0
      %884 = vmatpush.msra.mxu0 0.0
      %885 = vmatpush.msra.mxu0 0.0
      %886 = vmatpush.msra.mxu0 0.0
      %887 = vmatpush.msra.mxu0 0.0
      %888 = vmatpush.msra.mxu0 0.0
      %889 = vmatpush.msra.mxu0 %v499
      %890 = vmatmul.f32.gmra.mxu0 %v852
      %v891 = vpop.f32.mrf.mxu0
      %v892 = vadd.f32 %v849, %v891
      %893 = vdwg.mxu0
      %v896 = vrot.slane %v892, 4
      %v897 = vsel %vm494, %v872, %v896
      %v899 = vmul.f32 %v418, %v897
      %v900 = vadd.f32 %v841, %v899
      %s901 = scalar_lea.vmem %s3, 28
      %v902 = vld [vmem:[%s901] sm:$0xf]
      %s903 = scalar_lea.vmem %s4, 28
      %v904 = vld [vmem:[%s903] sm:$0xf]
      %906 = vset.pattern.permute.xlu0 0
      %907 = vperm.xlu0 %906, %v904
      %v908 = vpop.permute.xlu0 %907
      %v911 = vsel %vm490, %v902, 0
      %913 = vmatpush.msra.mxu0 0.0
      %914 = vmatpush.msra.mxu0 0.0
      %915 = vmatpush.msra.mxu0 0.0
      %916 = vmatpush.msra.mxu0 0.0
      %917 = vmatpush.msra.mxu0 0.0
      %918 = vmatpush.msra.mxu0 0.0
      %919 = vmatpush.msra.mxu0 0.0
      %920 = vmatpush.msra.mxu0 0.0
      %921 = vmatpush.msra.mxu0 0.0
      %922 = vmatpush.msra.mxu0 0.0
      %923 = vmatpush.msra.mxu0 0.0
      %924 = vmatpush.msra.mxu0 0.0
      %925 = vmatpush.msra.mxu0 0.0
      %926 = vmatpush.msra.mxu0 0.0
      %927 = vmatpush.msra.mxu0 0.0
      %928 = vmatpush.msra.mxu0 %v496
      %929 = vmatmul.f32.gmra.mxu0 %v911
      %v930 = vpop.f32.mrf.mxu0
      %v931 = vadd.f32 %v908, %v930
      %932 = vdwg.mxu0
      %933 = vmatpush.msra.mxu0 0.0
      %934 = vmatpush.msra.mxu0 0.0
      %935 = vmatpush.msra.mxu0 0.0
      %936 = vmatpush.msra.mxu0 0.0
      %937 = vmatpush.msra.mxu0 0.0
      %938 = vmatpush.msra.mxu0 0.0
      %939 = vmatpush.msra.mxu0 0.0
      %940 = vmatpush.msra.mxu0 0.0
      %941 = vmatpush.msra.mxu0 0.0
      %942 = vmatpush.msra.mxu0 0.0
      %943 = vmatpush.msra.mxu0 0.0
      %944 = vmatpush.msra.mxu0 0.0
      %945 = vmatpush.msra.mxu0 0.0
      %946 = vmatpush.msra.mxu0 0.0
      %947 = vmatpush.msra.mxu0 0.0
      %948 = vmatpush.msra.mxu0 %v499
      %949 = vmatmul.f32.gmra.mxu0 %v911
      %v950 = vpop.f32.mrf.mxu0
      %v951 = vadd.f32 %v908, %v950
      %952 = vdwg.mxu0
      %v955 = vrot.slane %v951, 4
      %v956 = vsel %vm494, %v931, %v955
      %v958 = vmul.f32 %v440, %v956
      %v959 = vadd.f32 %v900, %v958
      %s960 = scalar_lea.vmem %s3, 32
      %v961 = vld [vmem:[%s960] sm:$0xf]
      %s962 = scalar_lea.vmem %s4, 32
      %v963 = vld [vmem:[%s962] sm:$0xf]
      %965 = vset.pattern.permute.xlu0 0
      %966 = vperm.xlu0 %965, %v963
      %v967 = vpop.permute.xlu0 %966
      %v970 = vsel %vm490, %v961, 0
      %972 = vmatpush.msra.mxu0 0.0
      %973 = vmatpush.msra.mxu0 0.0
      %974 = vmatpush.msra.mxu0 0.0
      %975 = vmatpush.msra.mxu0 0.0
      %976 = vmatpush.msra.mxu0 0.0
      %977 = vmatpush.msra.mxu0 0.0
      %978 = vmatpush.msra.mxu0 0.0
      %979 = vmatpush.msra.mxu0 0.0
      %980 = vmatpush.msra.mxu0 0.0
      %981 = vmatpush.msra.mxu0 0.0
      %982 = vmatpush.msra.mxu0 0.0
      %983 = vmatpush.msra.mxu0 0.0
      %984 = vmatpush.msra.mxu0 0.0
      %985 = vmatpush.msra.mxu0 0.0
      %986 = vmatpush.msra.mxu0 0.0
      %987 = vmatpush.msra.mxu0 %v496
      %988 = vmatmul.f32.gmra.mxu0 %v970
      %v989 = vpop.f32.mrf.mxu0
      %v990 = vadd.f32 %v967, %v989
      %991 = vdwg.mxu0
      %992 = vmatpush.msra.mxu0 0.0
      %993 = vmatpush.msra.mxu0 0.0
      %994 = vmatpush.msra.mxu0 0.0
      %995 = vmatpush.msra.mxu0 0.0
      %996 = vmatpush.msra.mxu0 0.0
      %997 = vmatpush.msra.mxu0 0.0
      %998 = vmatpush.msra.mxu0 0.0
      %999 = vmatpush.msra.mxu0 0.0
      %1000 = vmatpush.msra.mxu0 0.0
      %1001 = vmatpush.msra.mxu0 0.0
      %1002 = vmatpush.msra.mxu0 0.0
      %1003 = vmatpush.msra.mxu0 0.0
      %1004 = vmatpush.msra.mxu0 0.0
      %1005 = vmatpush.msra.mxu0 0.0
      %1006 = vmatpush.msra.mxu0 0.0
      %1007 = vmatpush.msra.mxu0 %v499
      %1008 = vmatmul.f32.gmra.mxu0 %v970
      %v1009 = vpop.f32.mrf.mxu0
      %v1010 = vadd.f32 %v967, %v1009
      %1011 = vdwg.mxu0
      %v1014 = vrot.slane %v1010, 4
      %v1015 = vsel %vm494, %v990, %v1014
      %v1017 = vmul.f32 %v462, %v1015
      %v1018 = vadd.f32 %v959, %v1017
      %vm1019 = vcmp.ge.f32.partialorder %v1018, 0.0
      %v1020 = vmul.f32 %v1018, 0.2
      %v1021 = vsel %vm1019, %v1018, %v1020
      %1022 = vst [vmem:[%s279] sm:$0xff] %v1021
      %s1023 = smul.u32 2, %s21
      %p1024 = scmp.lt.s32.totalorder %s20, 1
      %s1025 = scalar_select %p1024, %s20, 1
      %p1026 = scmp.lt.s32.totalorder %s1023, 1
      %s1027 = scalar_select %p1026, %s1023, 1
      %s1028 = smul.addr %s1025, 2
      %s1029 = sadd.s32 %s1027, %s1028
      %s1030 = smul.addr %s1029, 4
      %s1031 = scalar_lea.vmem %s5, %s1030
      // Predicated region
      $region41: #{dcb_forward.4} parent=39 // pred_check
        %p1032 = pneg %p165
      $region42: #{dcb_forward.4} parent=39 // pred_check_branch
        %1034 = sbr.rel (%p1032) target = $region44
      $region43: #{dcb_forward.4} parent=39 // pred_region
        %s1035 = smul.u32 2, %s21
      $region44: #{dcb_forward.4} parent=39 // pred_fallthru
        _
    $region40: #{dcb_forward.4} parent=5 // pred_fallthru
      _
    %p1036 = scmp.le.s32.totalorder 2, %s11
    // Predicated region
    $region45: #{dcb_forward.4} parent=5 // pred_check
      %p1037 = pneg %p1036
    $region46: #{dcb_forward.4} parent=5 // pred_check_branch
      %1039 = sbr.rel (%p1037) target = $region48
    $region47: #{dcb_forward.4} parent=5 // pred_region
      %s1040 = ssub.s32 %s11, 2
      // Predicated region
      $region49: #{dcb_forward.4} parent=47 // pred_check
        %p1041 = pneg %p171
      $region50: #{dcb_forward.4} parent=47 // pred_check_branch
        %1043 = sbr.rel (%p1041) target = $region52
      $region51: #{dcb_forward.4} parent=47 // pred_region
        %s1044 = smul.u32 2, %s23
        %p1045 = scmp.lt.s32.totalorder %s22, 1
        %s1046 = scalar_select %p1045, %s22, 1
        %p1047 = scmp.lt.s32.totalorder %s1044, 1
        %s1048 = scalar_select %p1047, %s1044, 1
        %s1049 = smul.addr %s1046, 2
        %s1050 = sadd.s32 %s1048, %s1049
        %s1051 = smul.addr %s1050, 4
        %s1052 = scalar_lea.vmem %s5, %s1051
      $region52: #{dcb_forward.4} parent=47 // pred_fallthru
        _
    $region48: #{dcb_forward.4} parent=5 // pred_fallthru
      _
  $region6: #{dcb_forward.4} parent=0 // loop_footer
    %s15 = sadd.s32 1, %s11
  $region7: #{dcb_forward.4} parent=0 // loop_footer_branch
    %10 = sbr.rel target = $region3
  $region8: #{dcb_forward.4} parent=0 // loop_exit
    _

</llo_original>
